<compile_context>
chip_gen: v7x
topology: tpu7x:2x2x1
jax: 0.10.0
libtpu: 0.0.40
codegen_flags: <defaults>
</compile_context>

<pallas_src>
import functools

import jax
import jax.numpy as jnp
from jax.experimental import pallas as pl
from jax.experimental.pallas import tpu as pltpu

_HID = 128          # every layer's fan-in / fan-out zero-padded to 128 lanes
_N_LAYERS = 6


def _round_up(x, m):
    return ((x + m - 1) // m) * m


def _disc_kernel(x_ref, w_ref, b_ref, o_ref, *, elem_dtype):
    """One batch tile of the 6-layer MLP + sigmoid.

    x_ref: (bb, 128)      bf16  zero-padded [state|action] features
    w_ref: (6, 128, 128)  bf16  packed, tile-aligned weights (VMEM-resident)
    b_ref: (8, 128)       f32   packed biases, row l = layer l
    o_ref: (bb, 1)        f32   sigmoid probability
    """
    h = x_ref[...]                                    # (bb, 128) bf16
    for li in range(_N_LAYERS):
        # MXU matmul with f32 accumulation; w_ref[li] is an aligned static view.
        y = jnp.dot(h, w_ref[li], preferred_element_type=jnp.float32)
        if li < _N_LAYERS - 1:
            y = y + b_ref[li:li + 1, :]               # bias add in f32
            if elem_dtype == jnp.bfloat16:
                # v6e / v7x: native bf16 VPU -> ReLU touches half the vregs.
                # max(cast(y), 0) == cast(max(y, 0)) exactly.
                h = jnp.maximum(y.astype(jnp.bfloat16), 0)
            else:
                # v5e (no bf16 VALU): ReLU in f32, cast only for the MXU.
                h = jnp.maximum(y, 0.0).astype(jnp.bfloat16)
        else:
            # Only column 0 is the real logit; bias + sigmoid just that column.
            logit = y[:, 0:1] + b_ref[li:li + 1, 0:1]
            o_ref[...] = jax.nn.sigmoid(logit)


def pack_params(params, state_dim, action_dim):
    """Pack six (W, b) pairs into one (6, 128, 128) bf16 weight slab plus one
    (8, 128) f32 bias slab.

    Every layer is zero-padded to 128x128 so each kernel slice is a
    tile-aligned, zero-cost view; the zero padding keeps the math exact
    through every ReLU.
    """
    d_in = state_dim + action_dim
    assert d_in <= _HID, "input feature dim must fit in one 128-lane block"
    w_slab = jnp.zeros((_N_LAYERS, _HID, _HID), jnp.float32)
    b_slab = jnp.zeros((8, _HID), jnp.float32)
    for li, (w, b) in enumerate(params):
        w_slab = w_slab.at[li, :w.shape[0], :w.shape[1]].set(w.astype(jnp.float32))
        b_slab = b_slab.at[li, :b.shape[0]].set(b.astype(jnp.float32))
    return w_slab.astype(jnp.bfloat16), b_slab


def _device_config():
    kind = jax.devices()[0].device_kind.lower()
    n_tc = 2 if "v7" in kind else 1                                # v7x: 2 TCs / chip
    bf16_vpu = ("v6" in kind) or ("v7" in kind)
    return n_tc, (jnp.bfloat16 if bf16_vpu else jnp.float32)


def discriminator_forward(state, action, w_slab, b_slab, *, block_b=None):
    """Batched discriminator forward.

    state:  (B, state_dim)  or (state_dim,)
    action: (B, action_dim) or (action_dim,)
    Returns (B, 1) probabilities; for 1-D inputs returns shape (1,) like PyTorch.
    """
    single = state.ndim == 1
    if single:
        state = state[None, :]
        action = action[None, :]

    x = jnp.concatenate((state, action), axis=-1).astype(jnp.float32)
    B, d_in = x.shape
    assert d_in <= _HID, (d_in, _HID)

    n_tc, elem_dtype = _device_config()

    # Batch tile: as large as practical (per-grid-step overhead dominates this
    # tiny MLP), but keep >= n_tc tiles so both v7x TensorCores get work.
    if block_b is None:
        bb = min(1024, _round_up(pl.cdiv(B, n_tc), 8))
    else:
        bb = _round_up(min(block_b, B), 8)
    bb = max(bb, 8)
    b_padded = _round_up(B, bb)

    # Lane-dense input: pad the feature dim to 128 so the first matmul has a
    # clean K=128 and every weight block stays tile-aligned.
    x_p = jnp.zeros((b_padded, _HID), jnp.float32)
    x_p = x_p.at[:B, :d_in].set(x).astype(jnp.bfloat16)

    kernel = functools.partial(_disc_kernel, elem_dtype=elem_dtype)

    out = pl.pallas_call(
        kernel,
        out_shape=jax.ShapeDtypeStruct((b_padded, 1), jnp.float32),
        grid=(b_padded // bb,),
        in_specs=[
            pl.BlockSpec((bb, _HID), lambda i: (i, 0)),
            pl.BlockSpec(w_slab.shape, lambda i: (0, 0, 0)),   # weights stay VMEM-resident
            pl.BlockSpec(b_slab.shape, lambda i: (0, 0)),      # biases stay VMEM-resident
        ],
        # TODO(synk): a lane-dense (1, bb) output row would need an in-kernel
        # sublane->lane relayout; with only a handful of grid steps the masked
        # (bb, 1) store costs tens of cycles total, so the simple column is kept.
        out_specs=pl.BlockSpec((bb, 1), lambda i: (i, 0)),
        compiler_params=pltpu.CompilerParams(
            dimension_semantics=("parallel",)),                # v7x: both TCs split the batch
    )(x_p, w_slab, b_slab)

    out = out[:B]
    if single:
        return out.reshape(1)                                  # PyTorch (1,) for 1-D input
    return out


def init_params(key, state_dim, action_dim):
    """Deterministic init mimicking nn.Linear's U(-1/sqrt(fan_in), 1/sqrt(fan_in))."""
    dims = [state_dim + action_dim, 128, 128, 128, 32, 32, 1]
    params = []
    for i in range(len(dims) - 1):
        fan_in, fan_out = dims[i], dims[i + 1]
        key, kw, kb = jax.random.split(key, 3)
        bound = 1.0 / jnp.sqrt(fan_in)
        w = jax.random.uniform(kw, (fan_in, fan_out), jnp.float32, -bound, bound)
        b = jax.random.uniform(kb, (fan_out,), jnp.float32, -bound, bound)
        params.append((w, b))
    return params


def _reference_forward(x, params):
    h = x.astype(jnp.float32)
    for i, (w, b) in enumerate(params):
        h = h @ w + b
        if i < len(params) - 1:
            h = jnp.maximum(h, 0.0)
    return jax.nn.sigmoid(h)


if __name__ == "__main__":
    state_dim, action_dim = 16, 4
    B = 256

    key = jax.random.PRNGKey(0)
    k_params, k_state, k_action = jax.random.split(key, 3)

    params = init_params(k_params, state_dim, action_dim)
    w_slab, b_slab = pack_params(params, state_dim, action_dim)

    states = jax.random.normal(k_state, (B, state_dim), jnp.float32)
    actions = jax.random.normal(k_action, (B, action_dim), jnp.float32)

    ref = _reference_forward(jnp.concatenate((states, actions), axis=-1), params)

    # Batched path with the device-tuned tile size.
    out = jax.block_until_ready(discriminator_forward(states, actions, w_slab, b_slab))
    assert out.shape == (B, 1), out.shape
    # bf16 matmuls -> looser tolerance vs the f32 reference.
    assert jnp.allclose(out, ref, atol=2e-2), float(jnp.max(jnp.abs(out - ref)))

    # Multi-step grid path (exercises the batch pipeline explicitly).
    out2 = jax.block_until_ready(
        discriminator_forward(states, actions, w_slab, b_slab, block_b=64))
    assert jnp.allclose(out2, ref, atol=2e-2), float(jnp.max(jnp.abs(out2 - ref)))

    # Single (state, action) pair — original PyTorch forward() semantics, shape (1,).
    out1 = jax.block_until_ready(
        discriminator_forward(states[0], actions[0], w_slab, b_slab))
    assert out1.shape == (1,), out1.shape
    assert jnp.allclose(out1, ref[0], atol=2e-2)

    print("KERNEL_OK")
</pallas_src>

<mosaic_0001>
module attributes {stable_mosaic.version = 11 : i64} {
  func.func @_disc_kernel(%arg0: i32, %arg1: memref<256x128xbf16, #tpu.memory_space<vmem>>, %arg2: memref<6x128x128xbf16, #tpu.memory_space<vmem>>, %arg3: memref<8x128xf32, #tpu.memory_space<vmem>>, %arg4: memref<256x1xf32, #tpu.memory_space<vmem>>) attributes {dimension_semantics = [#tpu.dimension_semantics<parallel>], iteration_bounds = array<i64: 1>, scalar_prefetch = 0 : i64, scratch_operands = 0 : i64, tpu.core_type = #tpu.core_type<tc>, window_params = [{transform_indices = @transform_0, window_bounds = array<i64: 256, 128>}, {pipeline_mode = #tpu.pipeline_mode<synchronous>, transform_indices = @transform_1, window_bounds = array<i64: 6, 128, 128>}, {pipeline_mode = #tpu.pipeline_mode<synchronous>, transform_indices = @transform_2, window_bounds = array<i64: 8, 128>}, {transform_indices = @transform_3, window_bounds = array<i64: 256, 1>}]} {
    %c0 = arith.constant 0 : index
    %c0_0 = arith.constant 0 : index
    %0 = vector.load %arg1[%c0, %c0_0] : memref<256x128xbf16, #tpu.memory_space<vmem>>, vector<256x128xbf16>
    %c0_1 = arith.constant 0 : index
    %c0_2 = arith.constant 0 : index
    %c0_3 = arith.constant 0 : index
    %1 = vector.load %arg2[%c0_1, %c0_2, %c0_3] : memref<6x128x128xbf16, #tpu.memory_space<vmem>>, vector<1x128x128xbf16>
    %2 = vector.shape_cast %1 : vector<1x128x128xbf16> to vector<128x128xbf16>
    %cst = arith.constant dense<0.000000e+00> : vector<256x128xf32>
    %3 = tpu.matmul %0, %2, %cst {dimension_numbers = #tpu.dot_dimension_numbers<[1], [0], [0], [1], [0, 0, 1, 1], [], []>} : vector<256x128xbf16>, vector<128x128xbf16>, vector<256x128xf32> -> vector<256x128xf32>
    %c0_4 = arith.constant 0 : index
    %c0_5 = arith.constant 0 : index
    %4 = vector.load %arg3[%c0_4, %c0_5] : memref<8x128xf32, #tpu.memory_space<vmem>>, vector<1x128xf32>
    %5 = vector.broadcast %4 : vector<1x128xf32> to vector<256x128xf32>
    %6 = arith.addf %3, %5 : vector<256x128xf32>
    %cst_6 = arith.constant 0.000000e+00 : f32
    %7 = vector.broadcast %cst_6 : f32 to vector<256x128xf32>
    %8 = arith.maximumf %6, %7 : vector<256x128xf32>
    %9 = arith.truncf %8 : vector<256x128xf32> to vector<256x128xbf16>
    %c1 = arith.constant 1 : index
    %c0_7 = arith.constant 0 : index
    %c0_8 = arith.constant 0 : index
    %10 = vector.load %arg2[%c1, %c0_7, %c0_8] : memref<6x128x128xbf16, #tpu.memory_space<vmem>>, vector<1x128x128xbf16>
    %11 = vector.shape_cast %10 : vector<1x128x128xbf16> to vector<128x128xbf16>
    %cst_9 = arith.constant dense<0.000000e+00> : vector<256x128xf32>
    %12 = tpu.matmul %9, %11, %cst_9 {dimension_numbers = #tpu.dot_dimension_numbers<[1], [0], [0], [1], [0, 0, 1, 1], [], []>} : vector<256x128xbf16>, vector<128x128xbf16>, vector<256x128xf32> -> vector<256x128xf32>
    %c1_10 = arith.constant 1 : index
    %c0_11 = arith.constant 0 : index
    %13 = vector.load %arg3[%c1_10, %c0_11] : memref<8x128xf32, #tpu.memory_space<vmem>>, vector<1x128xf32>
    %14 = vector.broadcast %13 : vector<1x128xf32> to vector<256x128xf32>
    %15 = arith.addf %12, %14 : vector<256x128xf32>
    %cst_12 = arith.constant 0.000000e+00 : f32
    %16 = vector.broadcast %cst_12 : f32 to vector<256x128xf32>
    %17 = arith.maximumf %15, %16 : vector<256x128xf32>
    %18 = arith.truncf %17 : vector<256x128xf32> to vector<256x128xbf16>
    %c2 = arith.constant 2 : index
    %c0_13 = arith.constant 0 : index
    %c0_14 = arith.constant 0 : index
    %19 = vector.load %arg2[%c2, %c0_13, %c0_14] : memref<6x128x128xbf16, #tpu.memory_space<vmem>>, vector<1x128x128xbf16>
    %20 = vector.shape_cast %19 : vector<1x128x128xbf16> to vector<128x128xbf16>
    %cst_15 = arith.constant dense<0.000000e+00> : vector<256x128xf32>
    %21 = tpu.matmul %18, %20, %cst_15 {dimension_numbers = #tpu.dot_dimension_numbers<[1], [0], [0], [1], [0, 0, 1, 1], [], []>} : vector<256x128xbf16>, vector<128x128xbf16>, vector<256x128xf32> -> vector<256x128xf32>
    %c2_16 = arith.constant 2 : index
    %c0_17 = arith.constant 0 : index
    %22 = vector.load %arg3[%c2_16, %c0_17] : memref<8x128xf32, #tpu.memory_space<vmem>>, vector<1x128xf32>
    %23 = vector.broadcast %22 : vector<1x128xf32> to vector<256x128xf32>
    %24 = arith.addf %21, %23 : vector<256x128xf32>
    %cst_18 = arith.constant 0.000000e+00 : f32
    %25 = vector.broadcast %cst_18 : f32 to vector<256x128xf32>
    %26 = arith.maximumf %24, %25 : vector<256x128xf32>
    %27 = arith.truncf %26 : vector<256x128xf32> to vector<256x128xbf16>
    %c3 = arith.constant 3 : index
    %c0_19 = arith.constant 0 : index
    %c0_20 = arith.constant 0 : index
    %28 = vector.load %arg2[%c3, %c0_19, %c0_20] : memref<6x128x128xbf16, #tpu.memory_space<vmem>>, vector<1x128x128xbf16>
    %29 = vector.shape_cast %28 : vector<1x128x128xbf16> to vector<128x128xbf16>
    %cst_21 = arith.constant dense<0.000000e+00> : vector<256x128xf32>
    %30 = tpu.matmul %27, %29, %cst_21 {dimension_numbers = #tpu.dot_dimension_numbers<[1], [0], [0], [1], [0, 0, 1, 1], [], []>} : vector<256x128xbf16>, vector<128x128xbf16>, vector<256x128xf32> -> vector<256x128xf32>
    %c3_22 = arith.constant 3 : index
    %c0_23 = arith.constant 0 : index
    %31 = vector.load %arg3[%c3_22, %c0_23] : memref<8x128xf32, #tpu.memory_space<vmem>>, vector<1x128xf32>
    %32 = vector.broadcast %31 : vector<1x128xf32> to vector<256x128xf32>
    %33 = arith.addf %30, %32 : vector<256x128xf32>
    %cst_24 = arith.constant 0.000000e+00 : f32
    %34 = vector.broadcast %cst_24 : f32 to vector<256x128xf32>
    %35 = arith.maximumf %33, %34 : vector<256x128xf32>
    %36 = arith.truncf %35 : vector<256x128xf32> to vector<256x128xbf16>
    %c4 = arith.constant 4 : index
    %c0_25 = arith.constant 0 : index
    %c0_26 = arith.constant 0 : index
    %37 = vector.load %arg2[%c4, %c0_25, %c0_26] : memref<6x128x128xbf16, #tpu.memory_space<vmem>>, vector<1x128x128xbf16>
    %38 = vector.shape_cast %37 : vector<1x128x128xbf16> to vector<128x128xbf16>
    %cst_27 = arith.constant dense<0.000000e+00> : vector<256x128xf32>
    %39 = tpu.matmul %36, %38, %cst_27 {dimension_numbers = #tpu.dot_dimension_numbers<[1], [0], [0], [1], [0, 0, 1, 1], [], []>} : vector<256x128xbf16>, vector<128x128xbf16>, vector<256x128xf32> -> vector<256x128xf32>
    %c4_28 = arith.constant 4 : index
    %c0_29 = arith.constant 0 : index
    %40 = vector.load %arg3[%c4_28, %c0_29] : memref<8x128xf32, #tpu.memory_space<vmem>>, vector<1x128xf32>
    %41 = vector.broadcast %40 : vector<1x128xf32> to vector<256x128xf32>
    %42 = arith.addf %39, %41 : vector<256x128xf32>
    %cst_30 = arith.constant 0.000000e+00 : f32
    %43 = vector.broadcast %cst_30 : f32 to vector<256x128xf32>
    %44 = arith.maximumf %42, %43 : vector<256x128xf32>
    %45 = arith.truncf %44 : vector<256x128xf32> to vector<256x128xbf16>
    %c5 = arith.constant 5 : index
    %c0_31 = arith.constant 0 : index
    %c0_32 = arith.constant 0 : index
    %46 = vector.load %arg2[%c5, %c0_31, %c0_32] : memref<6x128x128xbf16, #tpu.memory_space<vmem>>, vector<1x128x128xbf16>
    %47 = vector.shape_cast %46 : vector<1x128x128xbf16> to vector<128x128xbf16>
    %cst_33 = arith.constant dense<0.000000e+00> : vector<256x128xf32>
    %48 = tpu.matmul %45, %47, %cst_33 {dimension_numbers = #tpu.dot_dimension_numbers<[1], [0], [0], [1], [0, 0, 1, 1], [], []>} : vector<256x128xbf16>, vector<128x128xbf16>, vector<256x128xf32> -> vector<256x128xf32>
    %49 = vector.extract_strided_slice %48 {offsets = [0, 0], sizes = [256, 1], strides = [1, 1]} : vector<256x128xf32> to vector<256x1xf32>
    %c5_34 = arith.constant 5 : index
    %c0_35 = arith.constant 0 : index
    %50 = vector.load %arg3[%c5_34, %c0_35] : memref<8x128xf32, #tpu.memory_space<vmem>>, vector<1x1xf32>
    %51 = vector.broadcast %50 : vector<1x1xf32> to vector<256x1xf32>
    %52 = arith.addf %49, %51 : vector<256x1xf32>
    %53 = arith.negf %52 : vector<256x1xf32>
    %54 = math.exp %53 : vector<256x1xf32>
    %cst_36 = arith.constant 1.000000e+00 : f32
    %55 = vector.broadcast %cst_36 : f32 to vector<256x1xf32>
    %56 = arith.addf %55, %54 : vector<256x1xf32>
    %57 = arith.divf %55, %56 : vector<256x1xf32>
    %c0_37 = arith.constant 0 : index
    %c0_38 = arith.constant 0 : index
    %58 = vector.load %arg4[%c0_37, %c0_38] : memref<256x1xf32, #tpu.memory_space<vmem>>, vector<256x1xf32>
    tpu.vector_store %arg4[%c0_37, %c0_38], %57 {strides = array<i32>} : memref<256x1xf32, #tpu.memory_space<vmem>>, vector<256x1xf32>,
    return
  }
  func.func @transform_0(%arg0: i32) -> (i32, i32) {
    %c0_i32 = arith.constant 0 : i32
    %c0_i32_0 = arith.constant 0 : i32
    return %arg0, %c0_i32 : i32, i32
  }
  func.func @transform_1(%arg0: i32) -> (i32, i32, i32) {
    %c0_i32 = arith.constant 0 : i32
    %c0_i32_0 = arith.constant 0 : i32
    %c0_i32_1 = arith.constant 0 : i32
    %c0_i32_2 = arith.constant 0 : i32
    return %c0_i32, %c0_i32_0, %c0_i32_1 : i32, i32, i32
  }
  func.func @transform_2(%arg0: i32) -> (i32, i32) {
    %c0_i32 = arith.constant 0 : i32
    %c0_i32_0 = arith.constant 0 : i32
    %c0_i32_1 = arith.constant 0 : i32
    return %c0_i32, %c0_i32_0 : i32, i32
  }
  func.func @transform_3(%arg0: i32) -> (i32, i32) {
    %c0_i32 = arith.constant 0 : i32
    %c0_i32_0 = arith.constant 0 : i32
    return %arg0, %c0_i32 : i32, i32
  }
}

</mosaic_0001>

<llo_original>
// kernel: tpu_custom_call.1
$region0: #{tpu_custom_call.1}
  #allocation0 [shape = 'u32[]', space=smem, size = 0x4, offset = 0x4, fixed_abs, tag = 'smem constant byte address 0x4 - core index']
  #allocation1 [shape = 'u32[144,128]{1,0:T(1,128)}', space=vmem, size = 0x12000, scoped, tag = 'internal scratch']
  %s0 = inlined_call_operand.hbm [shape: bf16[256,128], index: 0, kind: input, shape index: {}]
  %s1 = inlined_call_operand.hbm [shape: bf16[6,128,128], index: 1, kind: input, shape index: {}]
  %s2 = inlined_call_operand.hbm [shape: f32[8,128], index: 2, kind: input, shape index: {}]
  %s3 = inlined_call_operand.vmem [shape: f32[256,1], index: 3, kind: output, shape index: {}]
  %s4 = sld [smem:[#allocation0]]
  $region34: #{tpu_custom_call.1} parent=0
    _
  %s6 = ssub.s32 1, %s4
  %s7 = scalar_select 0, %s6, %s4
  $region1: #{tpu_custom_call.1} parent=0
    #allocation2 [shape = 'u8[65536]{0}', space=vmem, size = 0x10000, scoped, tag = 'input window, operand 0, single buffered']
    #allocation3 [shape = 's32[1]{0}', space=sflag, size = 0x4, scoped, tag = 'scoped memory for tpu_custom_call.1']
    #allocation4 [shape = 'u8[196608]{0}', space=vmem, size = 0x30000, scoped, tag = 'input window, operand 1, single buffered']
    #allocation5 [shape = 's32[1]{0}', space=sflag, size = 0x4, scoped, tag = 'scoped memory for tpu_custom_call.1']
    #allocation6 [shape = 'u8[4096]{0}', space=vmem, size = 0x1000, scoped, tag = 'input window, operand 2, single buffered']
    %8 = vsyncpa [#allocation3], 0
    %9 = vsyncpa [#allocation5], 0
    // Predicated region
    $region2: #{tpu_custom_call.1} parent=1 // pred_check
      _
    $region3: #{tpu_custom_call.1} parent=1 // pred_check_branch
      %11 = sbr.rel (0) target = $region5
    $region4: #{tpu_custom_call.1} parent=1 // pred_region
      %s13 = ssub.s32 2048, 2048
      %14 = vsyncadd [#allocation3], %s13
      %s15 = sshll.u32 [#allocation2], 4
      %s16 = int_to_ptr.vmem [resolvable:$true] %s15
      %21 = dma.hbm_to_vmem [thread:$0]  %s0, 2048, %s16, [#allocation3], 64, 64, 4
    $region5: #{tpu_custom_call.1} parent=1 // pred_fallthru
      _
    // Predicated region
    $region6: #{tpu_custom_call.1} parent=1 // pred_check
      _
    $region7: #{tpu_custom_call.1} parent=1 // pred_check_branch
      %23 = sbr.rel (0) target = $region9
    $region8: #{tpu_custom_call.1} parent=1 // pred_region
      %s25 = ssub.s32 6144, 6144
      %26 = vsyncadd [#allocation5], %s25
      %s27 = sshll.u32 [#allocation4], 4
      %s28 = int_to_ptr.vmem [resolvable:$true] %s27
      %33 = dma.hbm_to_vmem [thread:$0]  %s1, 6144, %s28, [#allocation5], 64, 64, 4
    $region9: #{tpu_custom_call.1} parent=1 // pred_fallthru
      _
    // Predicated region
    $region10: #{tpu_custom_call.1} parent=1 // pred_check
      _
    $region11: #{tpu_custom_call.1} parent=1 // pred_check_branch
      %35 = sbr.rel (0) target = $region13
    $region12: #{tpu_custom_call.1} parent=1 // pred_region
      %s37 = ssub.s32 128, 128
      %38 = vsyncadd [#allocation5], %s37
      %s40 = sshll.u32 [#allocation6], 4
      %s41 = int_to_ptr.vmem [resolvable:$true] %s40
      %43 = dma.hbm_to_vmem [thread:$0]  %s2, 128, %s41, [#allocation5]
    $region13: #{tpu_custom_call.1} parent=1 // pred_fallthru
      _
    // Predicated region
    $region14: #{tpu_custom_call.1} parent=1 // pred_check
      _
    $region15: #{tpu_custom_call.1} parent=1 // pred_check_branch
      %45 = sbr.rel (0) target = $region17
    $region16: #{tpu_custom_call.1} parent=1 // pred_region
      %46 = dma.done [#allocation3], 2048
    $region17: #{tpu_custom_call.1} parent=1 // pred_fallthru
      _
    // Predicated region
    $region18: #{tpu_custom_call.1} parent=1 // pred_check
      _
    $region19: #{tpu_custom_call.1} parent=1 // pred_check_branch
      %48 = sbr.rel (0) target = $region21
    $region20: #{tpu_custom_call.1} parent=1 // pred_region
      %49 = dma.done [#allocation5], 6144
    $region21: #{tpu_custom_call.1} parent=1 // pred_fallthru
      _
    // Predicated region
    $region22: #{tpu_custom_call.1} parent=1 // pred_check
      _
    $region23: #{tpu_custom_call.1} parent=1 // pred_check_branch
      %51 = sbr.rel (0) target = $region25
    $region24: #{tpu_custom_call.1} parent=1 // pred_region
      %52 = dma.done [#allocation5], 128
    $region25: #{tpu_custom_call.1} parent=1 // pred_fallthru
      _
    %v54 = vld [vmem:[#allocation2] sm:$0xf]
    %v55 = vld [vmem:[#allocation2 + $0x4] sm:$0xf]
    %v56 = vld [vmem:[#allocation2 + $0x8] sm:$0xf]
    %v57 = vld [vmem:[#allocation2 + $0xc] sm:$0xf]
    %v58 = vld [vmem:[#allocation2 + $0x10] sm:$0xf]
    %v59 = vld [vmem:[#allocation2 + $0x14] sm:$0xf]
    %v60 = vld [vmem:[#allocation2 + $0x18] sm:$0xf]
    %v61 = vld [vmem:[#allocation2 + $0x1c] sm:$0xf]
    %v62 = vld [vmem:[#allocation2 + $0x20] sm:$0xf]
    %v63 = vld [vmem:[#allocation2 + $0x24] sm:$0xf]
    %v64 = vld [vmem:[#allocation2 + $0x28] sm:$0xf]
    %v65 = vld [vmem:[#allocation2 + $0x2c] sm:$0xf]
    %v66 = vld [vmem:[#allocation2 + $0x30] sm:$0xf]
    %v67 = vld [vmem:[#allocation2 + $0x34] sm:$0xf]
    %v68 = vld [vmem:[#allocation2 + $0x38] sm:$0xf]
    %v69 = vld [vmem:[#allocation2 + $0x3c] sm:$0xf]
    %v70 = vld [vmem:[#allocation2 + $0x40] sm:$0xf]
    %v71 = vld [vmem:[#allocation2 + $0x44] sm:$0xf]
    %v72 = vld [vmem:[#allocation2 + $0x48] sm:$0xf]
    %v73 = vld [vmem:[#allocation2 + $0x4c] sm:$0xf]
    %v74 = vld [vmem:[#allocation2 + $0x50] sm:$0xf]
    %v75 = vld [vmem:[#allocation2 + $0x54] sm:$0xf]
    %v76 = vld [vmem:[#allocation2 + $0x58] sm:$0xf]
    %v77 = vld [vmem:[#allocation2 + $0x5c] sm:$0xf]
    %v78 = vld [vmem:[#allocation2 + $0x60] sm:$0xf]
    %v79 = vld [vmem:[#allocation2 + $0x64] sm:$0xf]
    %v80 = vld [vmem:[#allocation2 + $0x68] sm:$0xf]
    %v81 = vld [vmem:[#allocation2 + $0x6c] sm:$0xf]
    %v82 = vld [vmem:[#allocation2 + $0x70] sm:$0xf]
    %v83 = vld [vmem:[#allocation2 + $0x74] sm:$0xf]
    %v84 = vld [vmem:[#allocation2 + $0x78] sm:$0xf]
    %v85 = vld [vmem:[#allocation2 + $0x7c] sm:$0xf]
    %v86 = vld [vmem:[#allocation4] sm:$0xf]
    %v87 = vld [vmem:[#allocation4 + $0x4] sm:$0xf]
    %v88 = vld [vmem:[#allocation4 + $0x8] sm:$0xf]
    %v89 = vld [vmem:[#allocation4 + $0xc] sm:$0xf]
    %v90 = vld [vmem:[#allocation4 + $0x10] sm:$0xf]
    %v91 = vld [vmem:[#allocation4 + $0x14] sm:$0xf]
    %v92 = vld [vmem:[#allocation4 + $0x18] sm:$0xf]
    %v93 = vld [vmem:[#allocation4 + $0x1c] sm:$0xf]
    %v94 = vld [vmem:[#allocation4 + $0x20] sm:$0xf]
    %v95 = vld [vmem:[#allocation4 + $0x24] sm:$0xf]
    %v96 = vld [vmem:[#allocation4 + $0x28] sm:$0xf]
    %v97 = vld [vmem:[#allocation4 + $0x2c] sm:$0xf]
    %v98 = vld [vmem:[#allocation4 + $0x30] sm:$0xf]
    %v99 = vld [vmem:[#allocation4 + $0x34] sm:$0xf]
    %v100 = vld [vmem:[#allocation4 + $0x38] sm:$0xf]
    %v101 = vld [vmem:[#allocation4 + $0x3c] sm:$0xf]
    %v102 = vld [vmem:[#allocation6] sm:$0x1]
    %v103 = vlaneseq
    %v104 = vshrl.u32 %v103, 7
    %v105 = vsub.s32 0, %v104
    %v106 = vrot.slane %v102, %v105
    %v139 = vunpack.c.l.b16 %v54
    %v140 = vunpack.c.l.b16 %v55
    %v141 = vunpack.c.l.b16 %v56
    %v142 = vunpack.c.l.b16 %v57
    %v143 = vunpack.c.l.b16 %v58
    %v144 = vunpack.c.l.b16 %v59
    %v145 = vunpack.c.l.b16 %v60
    %v146 = vunpack.c.l.b16 %v61
    %v147 = vunpack.c.l.b16 %v62
    %v148 = vunpack.c.l.b16 %v63
    %v149 = vunpack.c.l.b16 %v64
    %v150 = vunpack.c.l.b16 %v65
    %v151 = vunpack.c.l.b16 %v66
    %v152 = vunpack.c.l.b16 %v67
    %v153 = vunpack.c.l.b16 %v68
    %v154 = vunpack.c.l.b16 %v69
    %v155 = vunpack.c.l.b16 %v70
    %v156 = vunpack.c.l.b16 %v71
    %v157 = vunpack.c.l.b16 %v72
    %v158 = vunpack.c.l.b16 %v73
    %v159 = vunpack.c.l.b16 %v74
    %v160 = vunpack.c.l.b16 %v75
    %v161 = vunpack.c.l.b16 %v76
    %v162 = vunpack.c.l.b16 %v77
    %v163 = vunpack.c.l.b16 %v78
    %v164 = vunpack.c.l.b16 %v79
    %v165 = vunpack.c.l.b16 %v80
    %v166 = vunpack.c.l.b16 %v81
    %v167 = vunpack.c.l.b16 %v82
    %v168 = vunpack.c.l.b16 %v83
    %v169 = vunpack.c.l.b16 %v84
    %v170 = vunpack.c.l.b16 %v85
    %v171 = vpack.c.b16 %v140, %v139
    %v172 = vpack.c.b16 %v142, %v141
    %v173 = vpack.c.b16 %v144, %v143
    %v174 = vpack.c.b16 %v146, %v145
    %v175 = vpack.c.b16 %v148, %v147
    %v176 = vpack.c.b16 %v150, %v149
    %v177 = vpack.c.b16 %v152, %v151
    %v178 = vpack.c.b16 %v154, %v153
    %v179 = vpack.c.b16 %v156, %v155
    %v180 = vpack.c.b16 %v158, %v157
    %v181 = vpack.c.b16 %v160, %v159
    %v182 = vpack.c.b16 %v162, %v161
    %v183 = vpack.c.b16 %v164, %v163
    %v184 = vpack.c.b16 %v166, %v165
    %v185 = vpack.c.b16 %v168, %v167
    %v186 = vpack.c.b16 %v170, %v169
    %v219 = vunpack.c.l.b16 %v86
    %v220 = vunpack.c.l.b16 %v87
    %v221 = vunpack.c.l.b16 %v88
    %v222 = vunpack.c.l.b16 %v89
    %v223 = vunpack.c.l.b16 %v90
    %v224 = vunpack.c.l.b16 %v91
    %v225 = vunpack.c.l.b16 %v92
    %v226 = vunpack.c.l.b16 %v93
    %v227 = vunpack.c.l.b16 %v94
    %v228 = vunpack.c.l.b16 %v95
    %v229 = vunpack.c.l.b16 %v96
    %v230 = vunpack.c.l.b16 %v97
    %v231 = vunpack.c.l.b16 %v98
    %v232 = vunpack.c.l.b16 %v99
    %v233 = vunpack.c.l.b16 %v100
    %v234 = vunpack.c.l.b16 %v101
    %v235 = vpack.c.b16 %v220, %v219
    %v236 = vpack.c.b16 %v222, %v221
    %v237 = vpack.c.b16 %v224, %v223
    %v238 = vpack.c.b16 %v226, %v225
    %v239 = vpack.c.b16 %v228, %v227
    %v240 = vpack.c.b16 %v230, %v229
    %v241 = vpack.c.b16 %v232, %v231
    %v242 = vpack.c.b16 %v234, %v233
    %251 = vmatprep.subr.bf16.mxu0 0
    %252 = vmatpush1.bf16.msra.mxu0 %v235
    %253 = vmatprep.subr.bf16.mxu0 0
    %254 = vmatpush1.bf16.msra.mxu0 %v236
    %255 = vmatprep.subr.bf16.mxu0 0
    %256 = vmatpush1.bf16.msra.mxu0 %v237
    %257 = vmatprep.subr.bf16.mxu0 0
    %258 = vmatpush1.bf16.msra.mxu0 %v238
    %259 = vmatprep.subr.bf16.mxu0 0
    %260 = vmatpush1.bf16.msra.mxu0 %v239
    %261 = vmatprep.subr.bf16.mxu0 0
    %262 = vmatpush1.bf16.msra.mxu0 %v240
    %263 = vmatprep.subr.bf16.mxu0 0
    %264 = vmatpush1.bf16.msra.mxu0 %v241
    %265 = vmatprep.subr.bf16.mxu0 0
    %266 = vmatpush1.bf16.msra.mxu0 %v242
    %267 = vmatprep.subr.bf16.mxu0 0
    %268 = vmatpush1.bf16.msra.mxu0 0
    %269 = vmatprep.subr.bf16.mxu0 0
    %270 = vmatpush1.bf16.msra.mxu0 0
    %271 = vmatprep.subr.bf16.mxu0 0
    %272 = vmatpush1.bf16.msra.mxu0 0
    %273 = vmatprep.subr.bf16.mxu0 0
    %274 = vmatpush1.bf16.msra.mxu0 0
    %275 = vmatprep.subr.bf16.mxu0 0
    %276 = vmatpush1.bf16.msra.mxu0 0
    %277 = vmatprep.subr.bf16.mxu0 0
    %278 = vmatpush1.bf16.msra.mxu0 0
    %279 = vmatprep.subr.bf16.mxu0 0
    %280 = vmatpush1.bf16.msra.mxu0 0
    %281 = vmatprep.subr.bf16.mxu0 0
    %282 = vmatpush1.bf16.msra.mxu0 0
    %283 = vmatprep.mubr.bf16.mxu0 0
    %284 = vmatmul.mubr.bf16.gmra.mrb[0].mxu0 %v171
    %v285 = vpop.f32.mrb[0].mxu0
    %v286 = vadd.f32 %v106, %v285
    %v287 = vpop.f32.mrb[0].mxu0
    %v288 = vpop.f32.mrb[0].mxu0
    %v289 = vadd.f32 %v106, %v288
    %v290 = vpop.f32.mrb[0].mxu0
    %291 = vmatprep.mubr.bf16.mxu0 0
    %292 = vmatmul.mubr.bf16.gmra.mrb[0].mxu0 %v172
    %v293 = vpop.f32.mrb[0].mxu0
    %v294 = vadd.f32 %v106, %v293
    %v295 = vpop.f32.mrb[0].mxu0
    %v296 = vpop.f32.mrb[0].mxu0
    %v297 = vadd.f32 %v106, %v296
    %v298 = vpop.f32.mrb[0].mxu0
    %299 = vmatprep.mubr.bf16.mxu0 0
    %300 = vmatmul.mubr.bf16.gmra.mrb[0].mxu0 %v173
    %v301 = vpop.f32.mrb[0].mxu0
    %v302 = vadd.f32 %v106, %v301
    %v303 = vpop.f32.mrb[0].mxu0
    %v304 = vpop.f32.mrb[0].mxu0
    %v305 = vadd.f32 %v106, %v304
    %v306 = vpop.f32.mrb[0].mxu0
    %307 = vmatprep.mubr.bf16.mxu0 0
    %308 = vmatmul.mubr.bf16.gmra.mrb[0].mxu0 %v174
    %v309 = vpop.f32.mrb[0].mxu0
    %v310 = vadd.f32 %v106, %v309
    %v311 = vpop.f32.mrb[0].mxu0
    %v312 = vpop.f32.mrb[0].mxu0
    %v313 = vadd.f32 %v106, %v312
    %v314 = vpop.f32.mrb[0].mxu0
    %315 = vmatprep.mubr.bf16.mxu0 0
    %316 = vmatmul.mubr.bf16.gmra.mrb[0].mxu0 %v175
    %v317 = vpop.f32.mrb[0].mxu0
    %v318 = vadd.f32 %v106, %v317
    %v319 = vpop.f32.mrb[0].mxu0
    %v320 = vpop.f32.mrb[0].mxu0
    %v321 = vadd.f32 %v106, %v320
    %v322 = vpop.f32.mrb[0].mxu0
    %323 = vmatprep.mubr.bf16.mxu0 0
    %324 = vmatmul.mubr.bf16.gmra.mrb[0].mxu0 %v176
    %v325 = vpop.f32.mrb[0].mxu0
    %v326 = vadd.f32 %v106, %v325
    %v327 = vpop.f32.mrb[0].mxu0
    %v328 = vpop.f32.mrb[0].mxu0
    %v329 = vadd.f32 %v106, %v328
    %v330 = vpop.f32.mrb[0].mxu0
    %331 = vmatprep.mubr.bf16.mxu0 0
    %332 = vmatmul.mubr.bf16.gmra.mrb[0].mxu0 %v177
    %v333 = vpop.f32.mrb[0].mxu0
    %v334 = vadd.f32 %v106, %v333
    %v335 = vpop.f32.mrb[0].mxu0
    %v336 = vpop.f32.mrb[0].mxu0
    %v337 = vadd.f32 %v106, %v336
    %v338 = vpop.f32.mrb[0].mxu0
    %339 = vmatprep.mubr.bf16.mxu0 0
    %340 = vmatmul.mubr.bf16.gmra.mrb[0].mxu0 %v178
    %v341 = vpop.f32.mrb[0].mxu0
    %v342 = vadd.f32 %v106, %v341
    %v343 = vpop.f32.mrb[0].mxu0
    %v344 = vpop.f32.mrb[0].mxu0
    %v345 = vadd.f32 %v106, %v344
    %v346 = vpop.f32.mrb[0].mxu0
    %347 = vmatprep.mubr.bf16.mxu0 0
    %348 = vmatmul.mubr.bf16.gmra.mrb[0].mxu0 %v179
    %v349 = vpop.f32.mrb[0].mxu0
    %v350 = vadd.f32 %v106, %v349
    %v351 = vpop.f32.mrb[0].mxu0
    %v352 = vpop.f32.mrb[0].mxu0
    %v353 = vadd.f32 %v106, %v352
    %v354 = vpop.f32.mrb[0].mxu0
    %355 = vmatprep.mubr.bf16.mxu0 0
    %356 = vmatmul.mubr.bf16.gmra.mrb[0].mxu0 %v180
    %v357 = vpop.f32.mrb[0].mxu0
    %v358 = vadd.f32 %v106, %v357
    %v359 = vpop.f32.mrb[0].mxu0
    %v360 = vpop.f32.mrb[0].mxu0
    %v361 = vadd.f32 %v106, %v360
    %v362 = vpop.f32.mrb[0].mxu0
    %363 = vmatprep.mubr.bf16.mxu0 0
    %364 = vmatmul.mubr.bf16.gmra.mrb[0].mxu0 %v181
    %v365 = vpop.f32.mrb[0].mxu0
    %v366 = vadd.f32 %v106, %v365
    %v367 = vpop.f32.mrb[0].mxu0
    %v368 = vpop.f32.mrb[0].mxu0
    %v369 = vadd.f32 %v106, %v368
    %v370 = vpop.f32.mrb[0].mxu0
    %371 = vmatprep.mubr.bf16.mxu0 0
    %372 = vmatmul.mubr.bf16.gmra.mrb[0].mxu0 %v182
    %v373 = vpop.f32.mrb[0].mxu0
    %v374 = vadd.f32 %v106, %v373
    %v375 = vpop.f32.mrb[0].mxu0
    %v376 = vpop.f32.mrb[0].mxu0
    %v377 = vadd.f32 %v106, %v376
    %v378 = vpop.f32.mrb[0].mxu0
    %379 = vmatprep.mubr.bf16.mxu0 0
    %380 = vmatmul.mubr.bf16.gmra.mrb[0].mxu0 %v183
    %v381 = vpop.f32.mrb[0].mxu0
    %v382 = vadd.f32 %v106, %v381
    %v383 = vpop.f32.mrb[0].mxu0
    %v384 = vpop.f32.mrb[0].mxu0
    %v385 = vadd.f32 %v106, %v384
    %v386 = vpop.f32.mrb[0].mxu0
    %387 = vmatprep.mubr.bf16.mxu0 0
    %388 = vmatmul.mubr.bf16.gmra.mrb[0].mxu0 %v184
    %v389 = vpop.f32.mrb[0].mxu0
    %v390 = vadd.f32 %v106, %v389
    %v391 = vpop.f32.mrb[0].mxu0
    %v392 = vpop.f32.mrb[0].mxu0
    %v393 = vadd.f32 %v106, %v392
    %v394 = vpop.f32.mrb[0].mxu0
    %395 = vmatprep.mubr.bf16.mxu0 0
    %396 = vmatmul.mubr.bf16.gmra.mrb[0].mxu0 %v185
    %v397 = vpop.f32.mrb[0].mxu0
    %v398 = vadd.f32 %v106, %v397
    %v399 = vpop.f32.mrb[0].mxu0
    %v400 = vpop.f32.mrb[0].mxu0
    %v401 = vadd.f32 %v106, %v400
    %v402 = vpop.f32.mrb[0].mxu0
    %403 = vmatprep.mubr.bf16.mxu0 0
    %404 = vmatmul.mubr.bf16.gmra.mrb[0].mxu0 %v186
    %v405 = vpop.f32.mrb[0].mxu0
    %v406 = vadd.f32 %v106, %v405
    %v407 = vpop.f32.mrb[0].mxu0
    %v408 = vpop.f32.mrb[0].mxu0
    %v409 = vadd.f32 %v106, %v408
    %v410 = vpop.f32.mrb[0].mxu0
    %411 = vdwg.mxu0
    %v412 = vmax.f32 %v286, 0.0
    %v413 = vmax.f32 %v289, 0.0
    %v414 = vmax.f32 %v294, 0.0
    %v415 = vmax.f32 %v297, 0.0
    %v416 = vmax.f32 %v302, 0.0
    %v417 = vmax.f32 %v305, 0.0
    %v418 = vmax.f32 %v310, 0.0
    %v419 = vmax.f32 %v313, 0.0
    %v420 = vmax.f32 %v318, 0.0
    %v421 = vmax.f32 %v321, 0.0
    %v422 = vmax.f32 %v326, 0.0
    %v423 = vmax.f32 %v329, 0.0
    %v424 = vmax.f32 %v334, 0.0
    %v425 = vmax.f32 %v337, 0.0
    %v426 = vmax.f32 %v342, 0.0
    %v427 = vmax.f32 %v345, 0.0
    %v428 = vmax.f32 %v350, 0.0
    %v429 = vmax.f32 %v353, 0.0
    %v430 = vmax.f32 %v358, 0.0
    %v431 = vmax.f32 %v361, 0.0
    %v432 = vmax.f32 %v366, 0.0
    %v433 = vmax.f32 %v369, 0.0
    %v434 = vmax.f32 %v374, 0.0
    %v435 = vmax.f32 %v377, 0.0
    %v436 = vmax.f32 %v382, 0.0
    %v437 = vmax.f32 %v385, 0.0
    %v438 = vmax.f32 %v390, 0.0
    %v439 = vmax.f32 %v393, 0.0
    %v440 = vmax.f32 %v398, 0.0
    %v441 = vmax.f32 %v401, 0.0
    %v442 = vmax.f32 %v406, 0.0
    %v443 = vmax.f32 %v409, 0.0
    %v444 = vpack.c.bf16 %v413, %v412
    %v445 = vpack.c.bf16 %v415, %v414
    %v446 = vpack.c.bf16 %v417, %v416
    %v447 = vpack.c.bf16 %v419, %v418
    %v448 = vpack.c.bf16 %v421, %v420
    %v449 = vpack.c.bf16 %v423, %v422
    %v450 = vpack.c.bf16 %v425, %v424
    %v451 = vpack.c.bf16 %v427, %v426
    %v452 = vpack.c.bf16 %v429, %v428
    %v453 = vpack.c.bf16 %v431, %v430
    %v454 = vpack.c.bf16 %v433, %v432
    %v455 = vpack.c.bf16 %v435, %v434
    %v456 = vpack.c.bf16 %v437, %v436
    %v457 = vpack.c.bf16 %v439, %v438
    %v458 = vpack.c.bf16 %v441, %v440
    %v459 = vpack.c.bf16 %v443, %v442
    %s460 = scalar_lea.vmem [#allocation4], 64
    %v461 = vld [vmem:[%s460] sm:$0xf]
    %v462 = vld [vmem:[%s460 + $0x4] sm:$0xf]
    %v463 = vld [vmem:[%s460 + $0x8] sm:$0xf]
    %v464 = vld [vmem:[%s460 + $0xc] sm:$0xf]
    %v465 = vld [vmem:[%s460 + $0x10] sm:$0xf]
    %v466 = vld [vmem:[%s460 + $0x14] sm:$0xf]
    %v467 = vld [vmem:[%s460 + $0x18] sm:$0xf]
    %v468 = vld [vmem:[%s460 + $0x1c] sm:$0xf]
    %v469 = vld [vmem:[%s460 + $0x20] sm:$0xf]
    %v470 = vld [vmem:[%s460 + $0x24] sm:$0xf]
    %v471 = vld [vmem:[%s460 + $0x28] sm:$0xf]
    %v472 = vld [vmem:[%s460 + $0x2c] sm:$0xf]
    %v473 = vld [vmem:[%s460 + $0x30] sm:$0xf]
    %v474 = vld [vmem:[%s460 + $0x34] sm:$0xf]
    %v475 = vld [vmem:[%s460 + $0x38] sm:$0xf]
    %v476 = vld [vmem:[%s460 + $0x3c] sm:$0xf]
    %v477 = vld [vmem:[#allocation6 + $0x1] sm:$0x1]
    %v478 = vlaneseq
    %v479 = vshrl.u32 %v478, 7
    %v480 = vsub.s32 0, %v479
    %v481 = vrot.slane %v477, %v480
    %v498 = vunpack.c.l.b16 %v461
    %v499 = vunpack.c.l.b16 %v462
    %v500 = vunpack.c.l.b16 %v463
    %v501 = vunpack.c.l.b16 %v464
    %v502 = vunpack.c.l.b16 %v465
    %v503 = vunpack.c.l.b16 %v466
    %v504 = vunpack.c.l.b16 %v467
    %v505 = vunpack.c.l.b16 %v468
    %v506 = vunpack.c.l.b16 %v469
    %v507 = vunpack.c.l.b16 %v470
    %v508 = vunpack.c.l.b16 %v471
    %v509 = vunpack.c.l.b16 %v472
    %v510 = vunpack.c.l.b16 %v473
    %v511 = vunpack.c.l.b16 %v474
    %v512 = vunpack.c.l.b16 %v475
    %v513 = vunpack.c.l.b16 %v476
    %v514 = vpack.c.b16 %v499, %v498
    %v515 = vpack.c.b16 %v501, %v500
    %v516 = vpack.c.b16 %v503, %v502
    %v517 = vpack.c.b16 %v505, %v504
    %v518 = vpack.c.b16 %v507, %v506
    %v519 = vpack.c.b16 %v509, %v508
    %v520 = vpack.c.b16 %v511, %v510
    %v521 = vpack.c.b16 %v513, %v512
    %530 = vmatprep.subr.bf16.mxu0 0
    %531 = vmatpush1.bf16.msra.mxu0 %v514
    %532 = vmatprep.subr.bf16.mxu0 0
    %533 = vmatpush1.bf16.msra.mxu0 %v515
    %534 = vmatprep.subr.bf16.mxu0 0
    %535 = vmatpush1.bf16.msra.mxu0 %v516
    %536 = vmatprep.subr.bf16.mxu0 0
    %537 = vmatpush1.bf16.msra.mxu0 %v517
    %538 = vmatprep.subr.bf16.mxu0 0
    %539 = vmatpush1.bf16.msra.mxu0 %v518
    %540 = vmatprep.subr.bf16.mxu0 0
    %541 = vmatpush1.bf16.msra.mxu0 %v519
    %542 = vmatprep.subr.bf16.mxu0 0
    %543 = vmatpush1.bf16.msra.mxu0 %v520
    %544 = vmatprep.subr.bf16.mxu0 0
    %545 = vmatpush1.bf16.msra.mxu0 %v521
    %546 = vmatprep.subr.bf16.mxu0 0
    %547 = vmatpush1.bf16.msra.mxu0 0
    %548 = vmatprep.subr.bf16.mxu0 0
    %549 = vmatpush1.bf16.msra.mxu0 0
    %550 = vmatprep.subr.bf16.mxu0 0
    %551 = vmatpush1.bf16.msra.mxu0 0
    %552 = vmatprep.subr.bf16.mxu0 0
    %553 = vmatpush1.bf16.msra.mxu0 0
    %554 = vmatprep.subr.bf16.mxu0 0
    %555 = vmatpush1.bf16.msra.mxu0 0
    %556 = vmatprep.subr.bf16.mxu0 0
    %557 = vmatpush1.bf16.msra.mxu0 0
    %558 = vmatprep.subr.bf16.mxu0 0
    %559 = vmatpush1.bf16.msra.mxu0 0
    %560 = vmatprep.subr.bf16.mxu0 0
    %561 = vmatpush1.bf16.msra.mxu0 0
    %562 = vmatprep.mubr.bf16.mxu0 0
    %563 = vmatmul.mubr.bf16.gmra.mrb[0].mxu0 %v444
    %v564 = vpop.f32.mrb[0].mxu0
    %v565 = vadd.f32 %v481, %v564
    %v566 = vpop.f32.mrb[0].mxu0
    %v567 = vpop.f32.mrb[0].mxu0
    %v568 = vadd.f32 %v481, %v567
    %v569 = vpop.f32.mrb[0].mxu0
    %570 = vmatprep.mubr.bf16.mxu0 0
    %571 = vmatmul.mubr.bf16.gmra.mrb[0].mxu0 %v445
    %v572 = vpop.f32.mrb[0].mxu0
    %v573 = vadd.f32 %v481, %v572
    %v574 = vpop.f32.mrb[0].mxu0
    %v575 = vpop.f32.mrb[0].mxu0
    %v576 = vadd.f32 %v481, %v575
    %v577 = vpop.f32.mrb[0].mxu0
    %578 = vmatprep.mubr.bf16.mxu0 0
    %579 = vmatmul.mubr.bf16.gmra.mrb[0].mxu0 %v446
    %v580 = vpop.f32.mrb[0].mxu0
    %v581 = vadd.f32 %v481, %v580
    %v582 = vpop.f32.mrb[0].mxu0
    %v583 = vpop.f32.mrb[0].mxu0
    %v584 = vadd.f32 %v481, %v583
    %v585 = vpop.f32.mrb[0].mxu0
    %586 = vmatprep.mubr.bf16.mxu0 0
    %587 = vmatmul.mubr.bf16.gmra.mrb[0].mxu0 %v447
    %v588 = vpop.f32.mrb[0].mxu0
    %v589 = vadd.f32 %v481, %v588
    %v590 = vpop.f32.mrb[0].mxu0
    %v591 = vpop.f32.mrb[0].mxu0
    %v592 = vadd.f32 %v481, %v591
    %v593 = vpop.f32.mrb[0].mxu0
    %594 = vmatprep.mubr.bf16.mxu0 0
    %595 = vmatmul.mubr.bf16.gmra.mrb[0].mxu0 %v448
    %v596 = vpop.f32.mrb[0].mxu0
    %v597 = vadd.f32 %v481, %v596
    %v598 = vpop.f32.mrb[0].mxu0
    %v599 = vpop.f32.mrb[0].mxu0
    %v600 = vadd.f32 %v481, %v599
    %v601 = vpop.f32.mrb[0].mxu0
    %602 = vmatprep.mubr.bf16.mxu0 0
    %603 = vmatmul.mubr.bf16.gmra.mrb[0].mxu0 %v449
    %v604 = vpop.f32.mrb[0].mxu0
    %v605 = vadd.f32 %v481, %v604
    %v606 = vpop.f32.mrb[0].mxu0
    %v607 = vpop.f32.mrb[0].mxu0
    %v608 = vadd.f32 %v481, %v607
    %v609 = vpop.f32.mrb[0].mxu0
    %610 = vmatprep.mubr.bf16.mxu0 0
    %611 = vmatmul.mubr.bf16.gmra.mrb[0].mxu0 %v450
    %v612 = vpop.f32.mrb[0].mxu0
    %v613 = vadd.f32 %v481, %v612
    %v614 = vpop.f32.mrb[0].mxu0
    %v615 = vpop.f32.mrb[0].mxu0
    %v616 = vadd.f32 %v481, %v615
    %v617 = vpop.f32.mrb[0].mxu0
    %618 = vmatprep.mubr.bf16.mxu0 0
    %619 = vmatmul.mubr.bf16.gmra.mrb[0].mxu0 %v451
    %v620 = vpop.f32.mrb[0].mxu0
    %v621 = vadd.f32 %v481, %v620
    %v622 = vpop.f32.mrb[0].mxu0
    %v623 = vpop.f32.mrb[0].mxu0
    %v624 = vadd.f32 %v481, %v623
    %v625 = vpop.f32.mrb[0].mxu0
    %626 = vmatprep.mubr.bf16.mxu0 0
    %627 = vmatmul.mubr.bf16.gmra.mrb[0].mxu0 %v452
    %v628 = vpop.f32.mrb[0].mxu0
    %v629 = vadd.f32 %v481, %v628
    %v630 = vpop.f32.mrb[0].mxu0
    %v631 = vpop.f32.mrb[0].mxu0
    %v632 = vadd.f32 %v481, %v631
    %v633 = vpop.f32.mrb[0].mxu0
    %634 = vmatprep.mubr.bf16.mxu0 0
    %635 = vmatmul.mubr.bf16.gmra.mrb[0].mxu0 %v453
    %v636 = vpop.f32.mrb[0].mxu0
    %v637 = vadd.f32 %v481, %v636
    %v638 = vpop.f32.mrb[0].mxu0
    %v639 = vpop.f32.mrb[0].mxu0
    %v640 = vadd.f32 %v481, %v639
    %v641 = vpop.f32.mrb[0].mxu0
    %642 = vmatprep.mubr.bf16.mxu0 0
    %643 = vmatmul.mubr.bf16.gmra.mrb[0].mxu0 %v454
    %v644 = vpop.f32.mrb[0].mxu0
    %v645 = vadd.f32 %v481, %v644
    %v646 = vpop.f32.mrb[0].mxu0
    %v647 = vpop.f32.mrb[0].mxu0
    %v648 = vadd.f32 %v481, %v647
    %v649 = vpop.f32.mrb[0].mxu0
    %650 = vmatprep.mubr.bf16.mxu0 0
    %651 = vmatmul.mubr.bf16.gmra.mrb[0].mxu0 %v455
    %v652 = vpop.f32.mrb[0].mxu0
    %v653 = vadd.f32 %v481, %v652
    %v654 = vpop.f32.mrb[0].mxu0
    %v655 = vpop.f32.mrb[0].mxu0
    %v656 = vadd.f32 %v481, %v655
    %v657 = vpop.f32.mrb[0].mxu0
    %658 = vmatprep.mubr.bf16.mxu0 0
    %659 = vmatmul.mubr.bf16.gmra.mrb[0].mxu0 %v456
    %v660 = vpop.f32.mrb[0].mxu0
    %v661 = vadd.f32 %v481, %v660
    %v662 = vpop.f32.mrb[0].mxu0
    %v663 = vpop.f32.mrb[0].mxu0
    %v664 = vadd.f32 %v481, %v663
    %v665 = vpop.f32.mrb[0].mxu0
    %666 = vmatprep.mubr.bf16.mxu0 0
    %667 = vmatmul.mubr.bf16.gmra.mrb[0].mxu0 %v457
    %v668 = vpop.f32.mrb[0].mxu0
    %v669 = vadd.f32 %v481, %v668
    %v670 = vpop.f32.mrb[0].mxu0
    %v671 = vpop.f32.mrb[0].mxu0
    %v672 = vadd.f32 %v481, %v671
    %v673 = vpop.f32.mrb[0].mxu0
    %674 = vmatprep.mubr.bf16.mxu0 0
    %675 = vmatmul.mubr.bf16.gmra.mrb[0].mxu0 %v458
    %v676 = vpop.f32.mrb[0].mxu0
    %v677 = vadd.f32 %v481, %v676
    %v678 = vpop.f32.mrb[0].mxu0
    %v679 = vpop.f32.mrb[0].mxu0
    %v680 = vadd.f32 %v481, %v679
    %v681 = vpop.f32.mrb[0].mxu0
    %682 = vmatprep.mubr.bf16.mxu0 0
    %683 = vmatmul.mubr.bf16.gmra.mrb[0].mxu0 %v459
    %v684 = vpop.f32.mrb[0].mxu0
    %v685 = vadd.f32 %v481, %v684
    %v686 = vpop.f32.mrb[0].mxu0
    %v687 = vpop.f32.mrb[0].mxu0
    %v688 = vadd.f32 %v481, %v687
    %v689 = vpop.f32.mrb[0].mxu0
    %690 = vdwg.mxu0
    %v691 = vmax.f32 %v565, 0.0
    %v692 = vmax.f32 %v568, 0.0
    %v693 = vmax.f32 %v573, 0.0
    %v694 = vmax.f32 %v576, 0.0
    %v695 = vmax.f32 %v581, 0.0
    %v696 = vmax.f32 %v584, 0.0
    %v697 = vmax.f32 %v589, 0.0
    %v698 = vmax.f32 %v592, 0.0
    %v699 = vmax.f32 %v597, 0.0
    %v700 = vmax.f32 %v600, 0.0
    %v701 = vmax.f32 %v605, 0.0
    %v702 = vmax.f32 %v608, 0.0
    %v703 = vmax.f32 %v613, 0.0
    %v704 = vmax.f32 %v616, 0.0
    %v705 = vmax.f32 %v621, 0.0
    %v706 = vmax.f32 %v624, 0.0
    %v707 = vmax.f32 %v629, 0.0
    %v708 = vmax.f32 %v632, 0.0
    %v709 = vmax.f32 %v637, 0.0
    %v710 = vmax.f32 %v640, 0.0
    %v711 = vmax.f32 %v645, 0.0
    %v712 = vmax.f32 %v648, 0.0
    %v713 = vmax.f32 %v653, 0.0
    %v714 = vmax.f32 %v656, 0.0
    %v715 = vmax.f32 %v661, 0.0
    %v716 = vmax.f32 %v664, 0.0
    %v717 = vmax.f32 %v669, 0.0
    %v718 = vmax.f32 %v672, 0.0
    %v719 = vmax.f32 %v677, 0.0
    %v720 = vmax.f32 %v680, 0.0
    %v721 = vmax.f32 %v685, 0.0
    %v722 = vmax.f32 %v688, 0.0
    %v723 = vpack.c.bf16 %v692, %v691
    %v724 = vpack.c.bf16 %v694, %v693
    %v725 = vpack.c.bf16 %v696, %v695
    %v726 = vpack.c.bf16 %v698, %v697
    %v727 = vpack.c.bf16 %v700, %v699
    %v728 = vpack.c.bf16 %v702, %v701
    %v729 = vpack.c.bf16 %v704, %v703
    %v730 = vpack.c.bf16 %v706, %v705
    %v731 = vpack.c.bf16 %v708, %v707
    %v732 = vpack.c.bf16 %v710, %v709
    %v733 = vpack.c.bf16 %v712, %v711
    %v734 = vpack.c.bf16 %v714, %v713
    %v735 = vpack.c.bf16 %v716, %v715
    %v736 = vpack.c.bf16 %v718, %v717
    %v737 = vpack.c.bf16 %v720, %v719
    %v738 = vpack.c.bf16 %v722, %v721
    %s739 = scalar_lea.vmem [#allocation4], 128
    %v740 = vld [vmem:[%s739] sm:$0xf]
    %v741 = vld [vmem:[%s739 + $0x4] sm:$0xf]
    %v742 = vld [vmem:[%s739 + $0x8] sm:$0xf]
    %v743 = vld [vmem:[%s739 + $0xc] sm:$0xf]
    %v744 = vld [vmem:[%s739 + $0x10] sm:$0xf]
    %v745 = vld [vmem:[%s739 + $0x14] sm:$0xf]
    %v746 = vld [vmem:[%s739 + $0x18] sm:$0xf]
    %v747 = vld [vmem:[%s739 + $0x1c] sm:$0xf]
    %v748 = vld [vmem:[%s739 + $0x20] sm:$0xf]
    %v749 = vld [vmem:[%s739 + $0x24] sm:$0xf]
    %v750 = vld [vmem:[%s739 + $0x28] sm:$0xf]
    %v751 = vld [vmem:[%s739 + $0x2c] sm:$0xf]
    %v752 = vld [vmem:[%s739 + $0x30] sm:$0xf]
    %v753 = vld [vmem:[%s739 + $0x34] sm:$0xf]
    %v754 = vld [vmem:[%s739 + $0x38] sm:$0xf]
    %v755 = vld [vmem:[%s739 + $0x3c] sm:$0xf]
    %v756 = vld [vmem:[#allocation6 + $0x2] sm:$0x1]
    %v757 = vlaneseq
    %v758 = vshrl.u32 %v757, 7
    %v759 = vsub.s32 0, %v758
    %v760 = vrot.slane %v756, %v759
    %v777 = vunpack.c.l.b16 %v740
    %v778 = vunpack.c.l.b16 %v741
    %v779 = vunpack.c.l.b16 %v742
    %v780 = vunpack.c.l.b16 %v743
    %v781 = vunpack.c.l.b16 %v744
    %v782 = vunpack.c.l.b16 %v745
    %v783 = vunpack.c.l.b16 %v746
    %v784 = vunpack.c.l.b16 %v747
    %v785 = vunpack.c.l.b16 %v748
    %v786 = vunpack.c.l.b16 %v749
    %v787 = vunpack.c.l.b16 %v750
    %v788 = vunpack.c.l.b16 %v751
    %v789 = vunpack.c.l.b16 %v752
    %v790 = vunpack.c.l.b16 %v753
    %v791 = vunpack.c.l.b16 %v754
    %v792 = vunpack.c.l.b16 %v755
    %v793 = vpack.c.b16 %v778, %v777
    %v794 = vpack.c.b16 %v780, %v779
    %v795 = vpack.c.b16 %v782, %v781
    %v796 = vpack.c.b16 %v784, %v783
    %v797 = vpack.c.b16 %v786, %v785
    %v798 = vpack.c.b16 %v788, %v787
    %v799 = vpack.c.b16 %v790, %v789
    %v800 = vpack.c.b16 %v792, %v791
    %809 = vmatprep.subr.bf16.mxu0 0
    %810 = vmatpush1.bf16.msra.mxu0 %v793
    %811 = vmatprep.subr.bf16.mxu0 0
    %812 = vmatpush1.bf16.msra.mxu0 %v794
    %813 = vmatprep.subr.bf16.mxu0 0
    %814 = vmatpush1.bf16.msra.mxu0 %v795
    %815 = vmatprep.subr.bf16.mxu0 0
    %816 = vmatpush1.bf16.msra.mxu0 %v796
    %817 = vmatprep.subr.bf16.mxu0 0
    %818 = vmatpush1.bf16.msra.mxu0 %v797
    %819 = vmatprep.subr.bf16.mxu0 0
    %820 = vmatpush1.bf16.msra.mxu0 %v798
    %821 = vmatprep.subr.bf16.mxu0 0
    %822 = vmatpush1.bf16.msra.mxu0 %v799
    %823 = vmatprep.subr.bf16.mxu0 0
    %824 = vmatpush1.bf16.msra.mxu0 %v800
    %825 = vmatprep.subr.bf16.mxu0 0
    %826 = vmatpush1.bf16.msra.mxu0 0
    %827 = vmatprep.subr.bf16.mxu0 0
    %828 = vmatpush1.bf16.msra.mxu0 0
    %829 = vmatprep.subr.bf16.mxu0 0
    %830 = vmatpush1.bf16.msra.mxu0 0
    %831 = vmatprep.subr.bf16.mxu0 0
    %832 = vmatpush1.bf16.msra.mxu0 0
    %833 = vmatprep.subr.bf16.mxu0 0
    %834 = vmatpush1.bf16.msra.mxu0 0
    %835 = vmatprep.subr.bf16.mxu0 0
    %836 = vmatpush1.bf16.msra.mxu0 0
    %837 = vmatprep.subr.bf16.mxu0 0
    %838 = vmatpush1.bf16.msra.mxu0 0
    %839 = vmatprep.subr.bf16.mxu0 0
    %840 = vmatpush1.bf16.msra.mxu0 0
    %841 = vmatprep.mubr.bf16.mxu0 0
    %842 = vmatmul.mubr.bf16.gmra.mrb[0].mxu0 %v723
    %v843 = vpop.f32.mrb[0].mxu0
    %v844 = vadd.f32 %v760, %v843
    %v845 = vpop.f32.mrb[0].mxu0
    %v846 = vpop.f32.mrb[0].mxu0
    %v847 = vadd.f32 %v760, %v846
    %v848 = vpop.f32.mrb[0].mxu0
    %849 = vmatprep.mubr.bf16.mxu0 0
    %850 = vmatmul.mubr.bf16.gmra.mrb[0].mxu0 %v724
    %v851 = vpop.f32.mrb[0].mxu0
    %v852 = vadd.f32 %v760, %v851
    %v853 = vpop.f32.mrb[0].mxu0
    %v854 = vpop.f32.mrb[0].mxu0
    %v855 = vadd.f32 %v760, %v854
    %v856 = vpop.f32.mrb[0].mxu0
    %857 = vmatprep.mubr.bf16.mxu0 0
    %858 = vmatmul.mubr.bf16.gmra.mrb[0].mxu0 %v725
    %v859 = vpop.f32.mrb[0].mxu0
    %v860 = vadd.f32 %v760, %v859
    %v861 = vpop.f32.mrb[0].mxu0
    %v862 = vpop.f32.mrb[0].mxu0
    %v863 = vadd.f32 %v760, %v862
    %v864 = vpop.f32.mrb[0].mxu0
    %865 = vmatprep.mubr.bf16.mxu0 0
    %866 = vmatmul.mubr.bf16.gmra.mrb[0].mxu0 %v726
    %v867 = vpop.f32.mrb[0].mxu0
    %v868 = vadd.f32 %v760, %v867
    %v869 = vpop.f32.mrb[0].mxu0
    %v870 = vpop.f32.mrb[0].mxu0
    %v871 = vadd.f32 %v760, %v870
    %v872 = vpop.f32.mrb[0].mxu0
    %873 = vmatprep.mubr.bf16.mxu0 0
    %874 = vmatmul.mubr.bf16.gmra.mrb[0].mxu0 %v727
    %v875 = vpop.f32.mrb[0].mxu0
    %v876 = vadd.f32 %v760, %v875
    %v877 = vpop.f32.mrb[0].mxu0
    %v878 = vpop.f32.mrb[0].mxu0
    %v879 = vadd.f32 %v760, %v878
    %v880 = vpop.f32.mrb[0].mxu0
    %881 = vmatprep.mubr.bf16.mxu0 0
    %882 = vmatmul.mubr.bf16.gmra.mrb[0].mxu0 %v728
    %v883 = vpop.f32.mrb[0].mxu0
    %v884 = vadd.f32 %v760, %v883
    %v885 = vpop.f32.mrb[0].mxu0
    %v886 = vpop.f32.mrb[0].mxu0
    %v887 = vadd.f32 %v760, %v886
    %v888 = vpop.f32.mrb[0].mxu0
    %889 = vmatprep.mubr.bf16.mxu0 0
    %890 = vmatmul.mubr.bf16.gmra.mrb[0].mxu0 %v729
    %v891 = vpop.f32.mrb[0].mxu0
    %v892 = vadd.f32 %v760, %v891
    %v893 = vpop.f32.mrb[0].mxu0
    %v894 = vpop.f32.mrb[0].mxu0
    %v895 = vadd.f32 %v760, %v894
    %v896 = vpop.f32.mrb[0].mxu0
    %897 = vmatprep.mubr.bf16.mxu0 0
    %898 = vmatmul.mubr.bf16.gmra.mrb[0].mxu0 %v730
    %v899 = vpop.f32.mrb[0].mxu0
    %v900 = vadd.f32 %v760, %v899
    %v901 = vpop.f32.mrb[0].mxu0
    %v902 = vpop.f32.mrb[0].mxu0
    %v903 = vadd.f32 %v760, %v902
    %v904 = vpop.f32.mrb[0].mxu0
    %905 = vmatprep.mubr.bf16.mxu0 0
    %906 = vmatmul.mubr.bf16.gmra.mrb[0].mxu0 %v731
    %v907 = vpop.f32.mrb[0].mxu0
    %v908 = vadd.f32 %v760, %v907
    %v909 = vpop.f32.mrb[0].mxu0
    %v910 = vpop.f32.mrb[0].mxu0
    %v911 = vadd.f32 %v760, %v910
    %v912 = vpop.f32.mrb[0].mxu0
    %913 = vmatprep.mubr.bf16.mxu0 0
    %914 = vmatmul.mubr.bf16.gmra.mrb[0].mxu0 %v732
    %v915 = vpop.f32.mrb[0].mxu0
    %v916 = vadd.f32 %v760, %v915
    %v917 = vpop.f32.mrb[0].mxu0
    %v918 = vpop.f32.mrb[0].mxu0
    %v919 = vadd.f32 %v760, %v918
    %v920 = vpop.f32.mrb[0].mxu0
    %921 = vmatprep.mubr.bf16.mxu0 0
    %922 = vmatmul.mubr.bf16.gmra.mrb[0].mxu0 %v733
    %v923 = vpop.f32.mrb[0].mxu0
    %v924 = vadd.f32 %v760, %v923
    %v925 = vpop.f32.mrb[0].mxu0
    %v926 = vpop.f32.mrb[0].mxu0
    %v927 = vadd.f32 %v760, %v926
    %v928 = vpop.f32.mrb[0].mxu0
    %929 = vmatprep.mubr.bf16.mxu0 0
    %930 = vmatmul.mubr.bf16.gmra.mrb[0].mxu0 %v734
    %v931 = vpop.f32.mrb[0].mxu0
    %v932 = vadd.f32 %v760, %v931
    %v933 = vpop.f32.mrb[0].mxu0
    %v934 = vpop.f32.mrb[0].mxu0
    %v935 = vadd.f32 %v760, %v934
    %v936 = vpop.f32.mrb[0].mxu0
    %937 = vmatprep.mubr.bf16.mxu0 0
    %938 = vmatmul.mubr.bf16.gmra.mrb[0].mxu0 %v735
    %v939 = vpop.f32.mrb[0].mxu0
    %v940 = vadd.f32 %v760, %v939
    %v941 = vpop.f32.mrb[0].mxu0
    %v942 = vpop.f32.mrb[0].mxu0
    %v943 = vadd.f32 %v760, %v942
    %v944 = vpop.f32.mrb[0].mxu0
    %945 = vmatprep.mubr.bf16.mxu0 0
    %946 = vmatmul.mubr.bf16.gmra.mrb[0].mxu0 %v736
    %v947 = vpop.f32.mrb[0].mxu0
    %v948 = vadd.f32 %v760, %v947
    %v949 = vpop.f32.mrb[0].mxu0
    %v950 = vpop.f32.mrb[0].mxu0
    %v951 = vadd.f32 %v760, %v950
    %v952 = vpop.f32.mrb[0].mxu0
    %953 = vmatprep.mubr.bf16.mxu0 0
    %954 = vmatmul.mubr.bf16.gmra.mrb[0].mxu0 %v737
    %v955 = vpop.f32.mrb[0].mxu0
    %v956 = vadd.f32 %v760, %v955
    %v957 = vpop.f32.mrb[0].mxu0
    %v958 = vpop.f32.mrb[0].mxu0
    %v959 = vadd.f32 %v760, %v958
    %v960 = vpop.f32.mrb[0].mxu0
    %961 = vmatprep.mubr.bf16.mxu0 0
    %962 = vmatmul.mubr.bf16.gmra.mrb[0].mxu0 %v738
    %v963 = vpop.f32.mrb[0].mxu0
    %v964 = vadd.f32 %v760, %v963
    %v965 = vpop.f32.mrb[0].mxu0
    %v966 = vpop.f32.mrb[0].mxu0
    %v967 = vadd.f32 %v760, %v966
    %v968 = vpop.f32.mrb[0].mxu0
    %969 = vdwg.mxu0
    %v970 = vmax.f32 %v844, 0.0
    %v971 = vmax.f32 %v847, 0.0
    %v972 = vmax.f32 %v852, 0.0
    %v973 = vmax.f32 %v855, 0.0
    %v974 = vmax.f32 %v860, 0.0
    %v975 = vmax.f32 %v863, 0.0
    %v976 = vmax.f32 %v868, 0.0
    %v977 = vmax.f32 %v871, 0.0
    %v978 = vmax.f32 %v876, 0.0
    %v979 = vmax.f32 %v879, 0.0
    %v980 = vmax.f32 %v884, 0.0
    %v981 = vmax.f32 %v887, 0.0
    %v982 = vmax.f32 %v892, 0.0
    %v983 = vmax.f32 %v895, 0.0
    %v984 = vmax.f32 %v900, 0.0
    %v985 = vmax.f32 %v903, 0.0
    %v986 = vmax.f32 %v908, 0.0
    %v987 = vmax.f32 %v911, 0.0
    %v988 = vmax.f32 %v916, 0.0
    %v989 = vmax.f32 %v919, 0.0
    %v990 = vmax.f32 %v924, 0.0
    %v991 = vmax.f32 %v927, 0.0
    %v992 = vmax.f32 %v932, 0.0
    %v993 = vmax.f32 %v935, 0.0
    %v994 = vmax.f32 %v940, 0.0
    %v995 = vmax.f32 %v943, 0.0
    %v996 = vmax.f32 %v948, 0.0
    %v997 = vmax.f32 %v951, 0.0
    %v998 = vmax.f32 %v956, 0.0
    %v999 = vmax.f32 %v959, 0.0
    %v1000 = vmax.f32 %v964, 0.0
    %v1001 = vmax.f32 %v967, 0.0
    %v1002 = vpack.c.bf16 %v971, %v970
    %v1003 = vpack.c.bf16 %v973, %v972
    %v1004 = vpack.c.bf16 %v975, %v974
    %v1005 = vpack.c.bf16 %v977, %v976
    %v1006 = vpack.c.bf16 %v979, %v978
    %v1007 = vpack.c.bf16 %v981, %v980
    %v1008 = vpack.c.bf16 %v983, %v982
    %v1009 = vpack.c.bf16 %v985, %v984
    %v1010 = vpack.c.bf16 %v987, %v986
    %v1011 = vpack.c.bf16 %v989, %v988
    %v1012 = vpack.c.bf16 %v991, %v990
    %v1013 = vpack.c.bf16 %v993, %v992
    %v1014 = vpack.c.bf16 %v995, %v994
    %v1015 = vpack.c.bf16 %v997, %v996
    %v1016 = vpack.c.bf16 %v999, %v998
    %v1017 = vpack.c.bf16 %v1001, %v1000
    %s1018 = scalar_lea.vmem [#allocation4], 192
    %v1019 = vld [vmem:[%s1018] sm:$0xf]
    %v1020 = vld [vmem:[%s1018 + $0x4] sm:$0xf]
    %v1021 = vld [vmem:[%s1018 + $0x8] sm:$0xf]
    %v1022 = vld [vmem:[%s1018 + $0xc] sm:$0xf]
    %v1023 = vld [vmem:[%s1018 + $0x10] sm:$0xf]
    %v1024 = vld [vmem:[%s1018 + $0x14] sm:$0xf]
    %v1025 = vld [vmem:[%s1018 + $0x18] sm:$0xf]
    %v1026 = vld [vmem:[%s1018 + $0x1c] sm:$0xf]
    %v1027 = vld [vmem:[%s1018 + $0x20] sm:$0xf]
    %v1028 = vld [vmem:[%s1018 + $0x24] sm:$0xf]
    %v1029 = vld [vmem:[%s1018 + $0x28] sm:$0xf]
    %v1030 = vld [vmem:[%s1018 + $0x2c] sm:$0xf]
    %v1031 = vld [vmem:[%s1018 + $0x30] sm:$0xf]
    %v1032 = vld [vmem:[%s1018 + $0x34] sm:$0xf]
    %v1033 = vld [vmem:[%s1018 + $0x38] sm:$0xf]
    %v1034 = vld [vmem:[%s1018 + $0x3c] sm:$0xf]
    %v1035 = vld [vmem:[#allocation6 + $0x3] sm:$0x1]
    %v1036 = vlaneseq
    %v1037 = vshrl.u32 %v1036, 7
    %v1038 = vsub.s32 0, %v1037
    %v1039 = vrot.slane %v1035, %v1038
    %v1056 = vunpack.c.l.b16 %v1019
    %v1057 = vunpack.c.l.b16 %v1020
    %v1058 = vunpack.c.l.b16 %v1021
    %v1059 = vunpack.c.l.b16 %v1022
    %v1060 = vunpack.c.l.b16 %v1023
    %v1061 = vunpack.c.l.b16 %v1024
    %v1062 = vunpack.c.l.b16 %v1025
    %v1063 = vunpack.c.l.b16 %v1026
    %v1064 = vunpack.c.l.b16 %v1027
    %v1065 = vunpack.c.l.b16 %v1028
    %v1066 = vunpack.c.l.b16 %v1029
    %v1067 = vunpack.c.l.b16 %v1030
    %v1068 = vunpack.c.l.b16 %v1031
    %v1069 = vunpack.c.l.b16 %v1032
    %v1070 = vunpack.c.l.b16 %v1033
    %v1071 = vunpack.c.l.b16 %v1034
    %v1072 = vpack.c.b16 %v1057, %v1056
    %v1073 = vpack.c.b16 %v1059, %v1058
    %v1074 = vpack.c.b16 %v1061, %v1060
    %v1075 = vpack.c.b16 %v1063, %v1062
    %v1076 = vpack.c.b16 %v1065, %v1064
    %v1077 = vpack.c.b16 %v1067, %v1066
    %v1078 = vpack.c.b16 %v1069, %v1068
    %v1079 = vpack.c.b16 %v1071, %v1070
    %1088 = vmatprep.subr.bf16.mxu0 0
    %1089 = vmatpush1.bf16.msra.mxu0 %v1072
    %1090 = vmatprep.subr.bf16.mxu0 0
    %1091 = vmatpush1.bf16.msra.mxu0 %v1073
    %1092 = vmatprep.subr.bf16.mxu0 0
    %1093 = vmatpush1.bf16.msra.mxu0 %v1074
    %1094 = vmatprep.subr.bf16.mxu0 0
    %1095 = vmatpush1.bf16.msra.mxu0 %v1075
    %1096 = vmatprep.subr.bf16.mxu0 0
    %1097 = vmatpush1.bf16.msra.mxu0 %v1076
    %1098 = vmatprep.subr.bf16.mxu0 0
    %1099 = vmatpush1.bf16.msra.mxu0 %v1077
    %1100 = vmatprep.subr.bf16.mxu0 0
    %1101 = vmatpush1.bf16.msra.mxu0 %v1078
    %1102 = vmatprep.subr.bf16.mxu0 0
    %1103 = vmatpush1.bf16.msra.mxu0 %v1079
    %1104 = vmatprep.subr.bf16.mxu0 0
    %1105 = vmatpush1.bf16.msra.mxu0 0
    %1106 = vmatprep.subr.bf16.mxu0 0
    %1107 = vmatpush1.bf16.msra.mxu0 0
    %1108 = vmatprep.subr.bf16.mxu0 0
    %1109 = vmatpush1.bf16.msra.mxu0 0
    %1110 = vmatprep.subr.bf16.mxu0 0
    %1111 = vmatpush1.bf16.msra.mxu0 0
    %1112 = vmatprep.subr.bf16.mxu0 0
    %1113 = vmatpush1.bf16.msra.mxu0 0
    %1114 = vmatprep.subr.bf16.mxu0 0
    %1115 = vmatpush1.bf16.msra.mxu0 0
    %1116 = vmatprep.subr.bf16.mxu0 0
    %1117 = vmatpush1.bf16.msra.mxu0 0
    %1118 = vmatprep.subr.bf16.mxu0 0
    %1119 = vmatpush1.bf16.msra.mxu0 0
    %1120 = vmatprep.mubr.bf16.mxu0 0
    %1121 = vmatmul.mubr.bf16.gmra.mrb[0].mxu0 %v1002
    %v1122 = vpop.f32.mrb[0].mxu0
    %v1123 = vadd.f32 %v1039, %v1122
    %v1124 = vpop.f32.mrb[0].mxu0
    %v1125 = vpop.f32.mrb[0].mxu0
    %v1126 = vadd.f32 %v1039, %v1125
    %v1127 = vpop.f32.mrb[0].mxu0
    %1128 = vmatprep.mubr.bf16.mxu0 0
    %1129 = vmatmul.mubr.bf16.gmra.mrb[0].mxu0 %v1003
    %v1130 = vpop.f32.mrb[0].mxu0
    %v1131 = vadd.f32 %v1039, %v1130
    %v1132 = vpop.f32.mrb[0].mxu0
    %v1133 = vpop.f32.mrb[0].mxu0
    %v1134 = vadd.f32 %v1039, %v1133
    %v1135 = vpop.f32.mrb[0].mxu0
    %1136 = vmatprep.mubr.bf16.mxu0 0
    %1137 = vmatmul.mubr.bf16.gmra.mrb[0].mxu0 %v1004
    %v1138 = vpop.f32.mrb[0].mxu0
    %v1139 = vadd.f32 %v1039, %v1138
    %v1140 = vpop.f32.mrb[0].mxu0
    %v1141 = vpop.f32.mrb[0].mxu0
    %v1142 = vadd.f32 %v1039, %v1141
    %v1143 = vpop.f32.mrb[0].mxu0
    %1144 = vmatprep.mubr.bf16.mxu0 0
    %1145 = vmatmul.mubr.bf16.gmra.mrb[0].mxu0 %v1005
    %v1146 = vpop.f32.mrb[0].mxu0
    %v1147 = vadd.f32 %v1039, %v1146
    %v1148 = vpop.f32.mrb[0].mxu0
    %v1149 = vpop.f32.mrb[0].mxu0
    %v1150 = vadd.f32 %v1039, %v1149
    %v1151 = vpop.f32.mrb[0].mxu0
    %1152 = vmatprep.mubr.bf16.mxu0 0
    %1153 = vmatmul.mubr.bf16.gmra.mrb[0].mxu0 %v1006
    %v1154 = vpop.f32.mrb[0].mxu0
    %v1155 = vadd.f32 %v1039, %v1154
    %v1156 = vpop.f32.mrb[0].mxu0
    %v1157 = vpop.f32.mrb[0].mxu0
    %v1158 = vadd.f32 %v1039, %v1157
    %v1159 = vpop.f32.mrb[0].mxu0
    %1160 = vmatprep.mubr.bf16.mxu0 0
    %1161 = vmatmul.mubr.bf16.gmra.mrb[0].mxu0 %v1007
    %v1162 = vpop.f32.mrb[0].mxu0
    %v1163 = vadd.f32 %v1039, %v1162
    %v1164 = vpop.f32.mrb[0].mxu0
    %v1165 = vpop.f32.mrb[0].mxu0
    %v1166 = vadd.f32 %v1039, %v1165
    %v1167 = vpop.f32.mrb[0].mxu0
    %1168 = vmatprep.mubr.bf16.mxu0 0
    %1169 = vmatmul.mubr.bf16.gmra.mrb[0].mxu0 %v1008
    %v1170 = vpop.f32.mrb[0].mxu0
    %v1171 = vadd.f32 %v1039, %v1170
    %v1172 = vpop.f32.mrb[0].mxu0
    %v1173 = vpop.f32.mrb[0].mxu0
    %v1174 = vadd.f32 %v1039, %v1173
    %v1175 = vpop.f32.mrb[0].mxu0
    %1176 = vmatprep.mubr.bf16.mxu0 0
    %1177 = vmatmul.mubr.bf16.gmra.mrb[0].mxu0 %v1009
    %v1178 = vpop.f32.mrb[0].mxu0
    %v1179 = vadd.f32 %v1039, %v1178
    %v1180 = vpop.f32.mrb[0].mxu0
    %v1181 = vpop.f32.mrb[0].mxu0
    %v1182 = vadd.f32 %v1039, %v1181
    %v1183 = vpop.f32.mrb[0].mxu0
    %1184 = vmatprep.mubr.bf16.mxu0 0
    %1185 = vmatmul.mubr.bf16.gmra.mrb[0].mxu0 %v1010
    %v1186 = vpop.f32.mrb[0].mxu0
    %v1187 = vadd.f32 %v1039, %v1186
    %v1188 = vpop.f32.mrb[0].mxu0
    %v1189 = vpop.f32.mrb[0].mxu0
    %v1190 = vadd.f32 %v1039, %v1189
    %v1191 = vpop.f32.mrb[0].mxu0
    %1192 = vmatprep.mubr.bf16.mxu0 0
    %1193 = vmatmul.mubr.bf16.gmra.mrb[0].mxu0 %v1011
    %v1194 = vpop.f32.mrb[0].mxu0
    %v1195 = vadd.f32 %v1039, %v1194
    %v1196 = vpop.f32.mrb[0].mxu0
    %v1197 = vpop.f32.mrb[0].mxu0
    %v1198 = vadd.f32 %v1039, %v1197
    %v1199 = vpop.f32.mrb[0].mxu0
    %1200 = vmatprep.mubr.bf16.mxu0 0
    %1201 = vmatmul.mubr.bf16.gmra.mrb[0].mxu0 %v1012
    %v1202 = vpop.f32.mrb[0].mxu0
    %v1203 = vadd.f32 %v1039, %v1202
    %v1204 = vpop.f32.mrb[0].mxu0
    %v1205 = vpop.f32.mrb[0].mxu0
    %v1206 = vadd.f32 %v1039, %v1205
    %v1207 = vpop.f32.mrb[0].mxu0
    %1208 = vmatprep.mubr.bf16.mxu0 0
    %1209 = vmatmul.mubr.bf16.gmra.mrb[0].mxu0 %v1013
    %v1210 = vpop.f32.mrb[0].mxu0
    %v1211 = vadd.f32 %v1039, %v1210
    %v1212 = vpop.f32.mrb[0].mxu0
    %v1213 = vpop.f32.mrb[0].mxu0
    %v1214 = vadd.f32 %v1039, %v1213
    %v1215 = vpop.f32.mrb[0].mxu0
    %1216 = vmatprep.mubr.bf16.mxu0 0
    %1217 = vmatmul.mubr.bf16.gmra.mrb[0].mxu0 %v1014
    %v1218 = vpop.f32.mrb[0].mxu0
    %v1219 = vadd.f32 %v1039, %v1218
    %v1220 = vpop.f32.mrb[0].mxu0
    %v1221 = vpop.f32.mrb[0].mxu0
    %v1222 = vadd.f32 %v1039, %v1221
    %v1223 = vpop.f32.mrb[0].mxu0
    %1224 = vmatprep.mubr.bf16.mxu0 0
    %1225 = vmatmul.mubr.bf16.gmra.mrb[0].mxu0 %v1015
    %v1226 = vpop.f32.mrb[0].mxu0
    %v1227 = vadd.f32 %v1039, %v1226
    %v1228 = vpop.f32.mrb[0].mxu0
    %v1229 = vpop.f32.mrb[0].mxu0
    %v1230 = vadd.f32 %v1039, %v1229
    %v1231 = vpop.f32.mrb[0].mxu0
    %1232 = vmatprep.mubr.bf16.mxu0 0
    %1233 = vmatmul.mubr.bf16.gmra.mrb[0].mxu0 %v1016
    %v1234 = vpop.f32.mrb[0].mxu0
    %v1235 = vadd.f32 %v1039, %v1234
    %v1236 = vpop.f32.mrb[0].mxu0
    %v1237 = vpop.f32.mrb[0].mxu0
    %v1238 = vadd.f32 %v1039, %v1237
    %v1239 = vpop.f32.mrb[0].mxu0
    %1240 = vmatprep.mubr.bf16.mxu0 0
    %1241 = vmatmul.mubr.bf16.gmra.mrb[0].mxu0 %v1017
    %v1242 = vpop.f32.mrb[0].mxu0
    %v1243 = vadd.f32 %v1039, %v1242
    %v1244 = vpop.f32.mrb[0].mxu0
    %v1245 = vpop.f32.mrb[0].mxu0
    %v1246 = vadd.f32 %v1039, %v1245
    %v1247 = vpop.f32.mrb[0].mxu0
    %1248 = vdwg.mxu0
    %v1249 = vmax.f32 %v1123, 0.0
    %v1250 = vmax.f32 %v1126, 0.0
    %v1251 = vmax.f32 %v1131, 0.0
    %v1252 = vmax.f32 %v1134, 0.0
    %v1253 = vmax.f32 %v1139, 0.0
    %v1254 = vmax.f32 %v1142, 0.0
    %v1255 = vmax.f32 %v1147, 0.0
    %v1256 = vmax.f32 %v1150, 0.0
    %v1257 = vmax.f32 %v1155, 0.0
    %v1258 = vmax.f32 %v1158, 0.0
    %v1259 = vmax.f32 %v1163, 0.0
    %v1260 = vmax.f32 %v1166, 0.0
    %v1261 = vmax.f32 %v1171, 0.0
    %v1262 = vmax.f32 %v1174, 0.0
    %v1263 = vmax.f32 %v1179, 0.0
    %v1264 = vmax.f32 %v1182, 0.0
    %v1265 = vmax.f32 %v1187, 0.0
    %v1266 = vmax.f32 %v1190, 0.0
    %v1267 = vmax.f32 %v1195, 0.0
    %v1268 = vmax.f32 %v1198, 0.0
    %v1269 = vmax.f32 %v1203, 0.0
    %v1270 = vmax.f32 %v1206, 0.0
    %v1271 = vmax.f32 %v1211, 0.0
    %v1272 = vmax.f32 %v1214, 0.0
    %v1273 = vmax.f32 %v1219, 0.0
    %v1274 = vmax.f32 %v1222, 0.0
    %v1275 = vmax.f32 %v1227, 0.0
    %v1276 = vmax.f32 %v1230, 0.0
    %v1277 = vmax.f32 %v1235, 0.0
    %v1278 = vmax.f32 %v1238, 0.0
    %v1279 = vmax.f32 %v1243, 0.0
    %v1280 = vmax.f32 %v1246, 0.0
    %v1281 = vpack.c.bf16 %v1250, %v1249
    %v1282 = vpack.c.bf16 %v1252, %v1251
    %v1283 = vpack.c.bf16 %v1254, %v1253
    %v1284 = vpack.c.bf16 %v1256, %v1255
    %v1285 = vpack.c.bf16 %v1258, %v1257
    %v1286 = vpack.c.bf16 %v1260, %v1259
    %v1287 = vpack.c.bf16 %v1262, %v1261
    %v1288 = vpack.c.bf16 %v1264, %v1263
    %v1289 = vpack.c.bf16 %v1266, %v1265
    %v1290 = vpack.c.bf16 %v1268, %v1267
    %v1291 = vpack.c.bf16 %v1270, %v1269
    %v1292 = vpack.c.bf16 %v1272, %v1271
    %v1293 = vpack.c.bf16 %v1274, %v1273
    %v1294 = vpack.c.bf16 %v1276, %v1275
    %v1295 = vpack.c.bf16 %v1278, %v1277
    %v1296 = vpack.c.bf16 %v1280, %v1279
    %s1297 = scalar_lea.vmem [#allocation4], 256
    %v1298 = vld [vmem:[%s1297] sm:$0xf]
    %v1299 = vld [vmem:[%s1297 + $0x4] sm:$0xf]
    %v1300 = vld [vmem:[%s1297 + $0x8] sm:$0xf]
    %v1301 = vld [vmem:[%s1297 + $0xc] sm:$0xf]
    %v1302 = vld [vmem:[%s1297 + $0x10] sm:$0xf]
    %v1303 = vld [vmem:[%s1297 + $0x14] sm:$0xf]
    %v1304 = vld [vmem:[%s1297 + $0x18] sm:$0xf]
    %v1305 = vld [vmem:[%s1297 + $0x1c] sm:$0xf]
    %v1306 = vld [vmem:[%s1297 + $0x20] sm:$0xf]
    %v1307 = vld [vmem:[%s1297 + $0x24] sm:$0xf]
    %v1308 = vld [vmem:[%s1297 + $0x28] sm:$0xf]
    %v1309 = vld [vmem:[%s1297 + $0x2c] sm:$0xf]
    %v1310 = vld [vmem:[%s1297 + $0x30] sm:$0xf]
    %v1311 = vld [vmem:[%s1297 + $0x34] sm:$0xf]
    %v1312 = vld [vmem:[%s1297 + $0x38] sm:$0xf]
    %v1313 = vld [vmem:[%s1297 + $0x3c] sm:$0xf]
    %v1314 = vld [vmem:[#allocation6 + $0x4] sm:$0x1]
    %v1315 = vlaneseq
    %v1316 = vshrl.u32 %v1315, 7
    %v1317 = vsub.s32 0, %v1316
    %v1318 = vrot.slane %v1314, %v1317
    %v1335 = vunpack.c.l.b16 %v1298
    %v1336 = vunpack.c.l.b16 %v1299
    %v1337 = vunpack.c.l.b16 %v1300
    %v1338 = vunpack.c.l.b16 %v1301
    %v1339 = vunpack.c.l.b16 %v1302
    %v1340 = vunpack.c.l.b16 %v1303
    %v1341 = vunpack.c.l.b16 %v1304
    %v1342 = vunpack.c.l.b16 %v1305
    %v1343 = vunpack.c.l.b16 %v1306
    %v1344 = vunpack.c.l.b16 %v1307
    %v1345 = vunpack.c.l.b16 %v1308
    %v1346 = vunpack.c.l.b16 %v1309
    %v1347 = vunpack.c.l.b16 %v1310
    %v1348 = vunpack.c.l.b16 %v1311
    %v1349 = vunpack.c.l.b16 %v1312
    %v1350 = vunpack.c.l.b16 %v1313
    %v1351 = vpack.c.b16 %v1336, %v1335
    %v1352 = vpack.c.b16 %v1338, %v1337
    %v1353 = vpack.c.b16 %v1340, %v1339
    %v1354 = vpack.c.b16 %v1342, %v1341
    %v1355 = vpack.c.b16 %v1344, %v1343
    %v1356 = vpack.c.b16 %v1346, %v1345
    %v1357 = vpack.c.b16 %v1348, %v1347
    %v1358 = vpack.c.b16 %v1350, %v1349
    %1367 = vmatprep.subr.bf16.mxu0 0
    %1368 = vmatpush1.bf16.msra.mxu0 %v1351
    %1369 = vmatprep.subr.bf16.mxu0 0
    %1370 = vmatpush1.bf16.msra.mxu0 %v1352
    %1371 = vmatprep.subr.bf16.mxu0 0
    %1372 = vmatpush1.bf16.msra.mxu0 %v1353
    %1373 = vmatprep.subr.bf16.mxu0 0
    %1374 = vmatpush1.bf16.msra.mxu0 %v1354
    %1375 = vmatprep.subr.bf16.mxu0 0
    %1376 = vmatpush1.bf16.msra.mxu0 %v1355
    %1377 = vmatprep.subr.bf16.mxu0 0
    %1378 = vmatpush1.bf16.msra.mxu0 %v1356
    %1379 = vmatprep.subr.bf16.mxu0 0
    %1380 = vmatpush1.bf16.msra.mxu0 %v1357
    %1381 = vmatprep.subr.bf16.mxu0 0
    %1382 = vmatpush1.bf16.msra.mxu0 %v1358
    %1383 = vmatprep.subr.bf16.mxu0 0
    %1384 = vmatpush1.bf16.msra.mxu0 0
    %1385 = vmatprep.subr.bf16.mxu0 0
    %1386 = vmatpush1.bf16.msra.mxu0 0
    %1387 = vmatprep.subr.bf16.mxu0 0
    %1388 = vmatpush1.bf16.msra.mxu0 0
    %1389 = vmatprep.subr.bf16.mxu0 0
    %1390 = vmatpush1.bf16.msra.mxu0 0
    %1391 = vmatprep.subr.bf16.mxu0 0
    %1392 = vmatpush1.bf16.msra.mxu0 0
    %1393 = vmatprep.subr.bf16.mxu0 0
    %1394 = vmatpush1.bf16.msra.mxu0 0
    %1395 = vmatprep.subr.bf16.mxu0 0
    %1396 = vmatpush1.bf16.msra.mxu0 0
    %1397 = vmatprep.subr.bf16.mxu0 0
    %1398 = vmatpush1.bf16.msra.mxu0 0
    %1399 = vmatprep.mubr.bf16.mxu0 0
    %1400 = vmatmul.mubr.bf16.gmra.mrb[0].mxu0 %v1281
    %v1401 = vpop.f32.mrb[0].mxu0
    %v1402 = vadd.f32 %v1318, %v1401
    %v1403 = vpop.f32.mrb[0].mxu0
    %v1404 = vpop.f32.mrb[0].mxu0
    %v1405 = vadd.f32 %v1318, %v1404
    %v1406 = vpop.f32.mrb[0].mxu0
    %1407 = vmatprep.mubr.bf16.mxu0 0
    %1408 = vmatmul.mubr.bf16.gmra.mrb[0].mxu0 %v1282
    %v1409 = vpop.f32.mrb[0].mxu0
    %v1410 = vadd.f32 %v1318, %v1409
    %v1411 = vpop.f32.mrb[0].mxu0
    %v1412 = vpop.f32.mrb[0].mxu0
    %v1413 = vadd.f32 %v1318, %v1412
    %v1414 = vpop.f32.mrb[0].mxu0
    %1415 = vmatprep.mubr.bf16.mxu0 0
    %1416 = vmatmul.mubr.bf16.gmra.mrb[0].mxu0 %v1283
    %v1417 = vpop.f32.mrb[0].mxu0
    %v1418 = vadd.f32 %v1318, %v1417
    %v1419 = vpop.f32.mrb[0].mxu0
    %v1420 = vpop.f32.mrb[0].mxu0
    %v1421 = vadd.f32 %v1318, %v1420
    %v1422 = vpop.f32.mrb[0].mxu0
    %1423 = vmatprep.mubr.bf16.mxu0 0
    %1424 = vmatmul.mubr.bf16.gmra.mrb[0].mxu0 %v1284
    %v1425 = vpop.f32.mrb[0].mxu0
    %v1426 = vadd.f32 %v1318, %v1425
    %v1427 = vpop.f32.mrb[0].mxu0
    %v1428 = vpop.f32.mrb[0].mxu0
    %v1429 = vadd.f32 %v1318, %v1428
    %v1430 = vpop.f32.mrb[0].mxu0
    %1431 = vmatprep.mubr.bf16.mxu0 0
    %1432 = vmatmul.mubr.bf16.gmra.mrb[0].mxu0 %v1285
    %v1433 = vpop.f32.mrb[0].mxu0
    %v1434 = vadd.f32 %v1318, %v1433
    %v1435 = vpop.f32.mrb[0].mxu0
    %v1436 = vpop.f32.mrb[0].mxu0
    %v1437 = vadd.f32 %v1318, %v1436
    %v1438 = vpop.f32.mrb[0].mxu0
    %1439 = vmatprep.mubr.bf16.mxu0 0
    %1440 = vmatmul.mubr.bf16.gmra.mrb[0].mxu0 %v1286
    %v1441 = vpop.f32.mrb[0].mxu0
    %v1442 = vadd.f32 %v1318, %v1441
    %v1443 = vpop.f32.mrb[0].mxu0
    %v1444 = vpop.f32.mrb[0].mxu0
    %v1445 = vadd.f32 %v1318, %v1444
    %v1446 = vpop.f32.mrb[0].mxu0
    %1447 = vmatprep.mubr.bf16.mxu0 0
    %1448 = vmatmul.mubr.bf16.gmra.mrb[0].mxu0 %v1287
    %v1449 = vpop.f32.mrb[0].mxu0
    %v1450 = vadd.f32 %v1318, %v1449
    %v1451 = vpop.f32.mrb[0].mxu0
    %v1452 = vpop.f32.mrb[0].mxu0
    %v1453 = vadd.f32 %v1318, %v1452
    %v1454 = vpop.f32.mrb[0].mxu0
    %1455 = vmatprep.mubr.bf16.mxu0 0
    %1456 = vmatmul.mubr.bf16.gmra.mrb[0].mxu0 %v1288
    %v1457 = vpop.f32.mrb[0].mxu0
    %v1458 = vadd.f32 %v1318, %v1457
    %v1459 = vpop.f32.mrb[0].mxu0
    %v1460 = vpop.f32.mrb[0].mxu0
    %v1461 = vadd.f32 %v1318, %v1460
    %v1462 = vpop.f32.mrb[0].mxu0
    %1463 = vmatprep.mubr.bf16.mxu0 0
    %1464 = vmatmul.mubr.bf16.gmra.mrb[0].mxu0 %v1289
    %v1465 = vpop.f32.mrb[0].mxu0
    %v1466 = vadd.f32 %v1318, %v1465
    %v1467 = vpop.f32.mrb[0].mxu0
    %v1468 = vpop.f32.mrb[0].mxu0
    %v1469 = vadd.f32 %v1318, %v1468
    %v1470 = vpop.f32.mrb[0].mxu0
    %1471 = vmatprep.mubr.bf16.mxu0 0
    %1472 = vmatmul.mubr.bf16.gmra.mrb[0].mxu0 %v1290
    %v1473 = vpop.f32.mrb[0].mxu0
    %v1474 = vadd.f32 %v1318, %v1473
    %v1475 = vpop.f32.mrb[0].mxu0
    %v1476 = vpop.f32.mrb[0].mxu0
    %v1477 = vadd.f32 %v1318, %v1476
    %v1478 = vpop.f32.mrb[0].mxu0
    %1479 = vmatprep.mubr.bf16.mxu0 0
    %1480 = vmatmul.mubr.bf16.gmra.mrb[0].mxu0 %v1291
    %v1481 = vpop.f32.mrb[0].mxu0
    %v1482 = vadd.f32 %v1318, %v1481
    %v1483 = vpop.f32.mrb[0].mxu0
    %v1484 = vpop.f32.mrb[0].mxu0
    %v1485 = vadd.f32 %v1318, %v1484
    %v1486 = vpop.f32.mrb[0].mxu0
    %1487 = vmatprep.mubr.bf16.mxu0 0
    %1488 = vmatmul.mubr.bf16.gmra.mrb[0].mxu0 %v1292
    %v1489 = vpop.f32.mrb[0].mxu0
    %v1490 = vadd.f32 %v1318, %v1489
    %v1491 = vpop.f32.mrb[0].mxu0
    %v1492 = vpop.f32.mrb[0].mxu0
    %v1493 = vadd.f32 %v1318, %v1492
    %v1494 = vpop.f32.mrb[0].mxu0
    %1495 = vmatprep.mubr.bf16.mxu0 0
    %1496 = vmatmul.mubr.bf16.gmra.mrb[0].mxu0 %v1293
    %v1497 = vpop.f32.mrb[0].mxu0
    %v1498 = vadd.f32 %v1318, %v1497
    %v1499 = vpop.f32.mrb[0].mxu0
    %v1500 = vpop.f32.mrb[0].mxu0
    %v1501 = vadd.f32 %v1318, %v1500
    %v1502 = vpop.f32.mrb[0].mxu0
    %1503 = vmatprep.mubr.bf16.mxu0 0
    %1504 = vmatmul.mubr.bf16.gmra.mrb[0].mxu0 %v1294
    %v1505 = vpop.f32.mrb[0].mxu0
    %v1506 = vadd.f32 %v1318, %v1505
    %v1507 = vpop.f32.mrb[0].mxu0
    %v1508 = vpop.f32.mrb[0].mxu0
    %v1509 = vadd.f32 %v1318, %v1508
    %v1510 = vpop.f32.mrb[0].mxu0
    %1511 = vmatprep.mubr.bf16.mxu0 0
    %1512 = vmatmul.mubr.bf16.gmra.mrb[0].mxu0 %v1295
    %v1513 = vpop.f32.mrb[0].mxu0
    %v1514 = vadd.f32 %v1318, %v1513
    %v1515 = vpop.f32.mrb[0].mxu0
    %v1516 = vpop.f32.mrb[0].mxu0
    %v1517 = vadd.f32 %v1318, %v1516
    %v1518 = vpop.f32.mrb[0].mxu0
    %1519 = vmatprep.mubr.bf16.mxu0 0
    %1520 = vmatmul.mubr.bf16.gmra.mrb[0].mxu0 %v1296
    %v1521 = vpop.f32.mrb[0].mxu0
    %v1522 = vadd.f32 %v1318, %v1521
    %v1523 = vpop.f32.mrb[0].mxu0
    %v1524 = vpop.f32.mrb[0].mxu0
    %v1525 = vadd.f32 %v1318, %v1524
    %v1526 = vpop.f32.mrb[0].mxu0
    %1527 = vdwg.mxu0
    %v1528 = vmax.f32 %v1402, 0.0
    %v1529 = vmax.f32 %v1405, 0.0
    %v1530 = vmax.f32 %v1410, 0.0
    %v1531 = vmax.f32 %v1413, 0.0
    %v1532 = vmax.f32 %v1418, 0.0
    %v1533 = vmax.f32 %v1421, 0.0
    %v1534 = vmax.f32 %v1426, 0.0
    %v1535 = vmax.f32 %v1429, 0.0
    %v1536 = vmax.f32 %v1434, 0.0
    %v1537 = vmax.f32 %v1437, 0.0
    %v1538 = vmax.f32 %v1442, 0.0
    %v1539 = vmax.f32 %v1445, 0.0
    %v1540 = vmax.f32 %v1450, 0.0
    %v1541 = vmax.f32 %v1453, 0.0
    %v1542 = vmax.f32 %v1458, 0.0
    %v1543 = vmax.f32 %v1461, 0.0
    %v1544 = vmax.f32 %v1466, 0.0
    %v1545 = vmax.f32 %v1469, 0.0
    %v1546 = vmax.f32 %v1474, 0.0
    %v1547 = vmax.f32 %v1477, 0.0
    %v1548 = vmax.f32 %v1482, 0.0
    %v1549 = vmax.f32 %v1485, 0.0
    %v1550 = vmax.f32 %v1490, 0.0
    %v1551 = vmax.f32 %v1493, 0.0
    %v1552 = vmax.f32 %v1498, 0.0
    %v1553 = vmax.f32 %v1501, 0.0
    %v1554 = vmax.f32 %v1506, 0.0
    %v1555 = vmax.f32 %v1509, 0.0
    %v1556 = vmax.f32 %v1514, 0.0
    %v1557 = vmax.f32 %v1517, 0.0
    %v1558 = vmax.f32 %v1522, 0.0
    %v1559 = vmax.f32 %v1525, 0.0
    %v1560 = vpack.c.bf16 %v1529, %v1528
    %v1561 = vpack.c.bf16 %v1531, %v1530
    %v1562 = vpack.c.bf16 %v1533, %v1532
    %v1563 = vpack.c.bf16 %v1535, %v1534
    %v1564 = vpack.c.bf16 %v1537, %v1536
    %v1565 = vpack.c.bf16 %v1539, %v1538
    %v1566 = vpack.c.bf16 %v1541, %v1540
    %v1567 = vpack.c.bf16 %v1543, %v1542
    %v1568 = vpack.c.bf16 %v1545, %v1544
    %v1569 = vpack.c.bf16 %v1547, %v1546
    %v1570 = vpack.c.bf16 %v1549, %v1548
    %v1571 = vpack.c.bf16 %v1551, %v1550
    %v1572 = vpack.c.bf16 %v1553, %v1552
    %v1573 = vpack.c.bf16 %v1555, %v1554
    %v1574 = vpack.c.bf16 %v1557, %v1556
    %v1575 = vpack.c.bf16 %v1559, %v1558
    %s1576 = scalar_lea.vmem [#allocation4], 320
    %v1577 = vld [vmem:[%s1576] sm:$0xf]
    %v1578 = vld [vmem:[%s1576 + $0x4] sm:$0xf]
    %v1579 = vld [vmem:[%s1576 + $0x8] sm:$0xf]
    %v1580 = vld [vmem:[%s1576 + $0xc] sm:$0xf]
    %v1581 = vld [vmem:[%s1576 + $0x10] sm:$0xf]
    %v1582 = vld [vmem:[%s1576 + $0x14] sm:$0xf]
    %v1583 = vld [vmem:[%s1576 + $0x18] sm:$0xf]
    %v1584 = vld [vmem:[%s1576 + $0x1c] sm:$0xf]
    %v1585 = vld [vmem:[%s1576 + $0x20] sm:$0xf]
    %v1586 = vld [vmem:[%s1576 + $0x24] sm:$0xf]
    %v1587 = vld [vmem:[%s1576 + $0x28] sm:$0xf]
    %v1588 = vld [vmem:[%s1576 + $0x2c] sm:$0xf]
    %v1589 = vld [vmem:[%s1576 + $0x30] sm:$0xf]
    %v1590 = vld [vmem:[%s1576 + $0x34] sm:$0xf]
    %v1591 = vld [vmem:[%s1576 + $0x38] sm:$0xf]
    %v1592 = vld [vmem:[%s1576 + $0x3c] sm:$0xf]
    %v1609 = vunpack.c.l.b16 %v1577
    %v1610 = vunpack.c.l.b16 %v1578
    %v1611 = vunpack.c.l.b16 %v1579
    %v1612 = vunpack.c.l.b16 %v1580
    %v1613 = vunpack.c.l.b16 %v1581
    %v1614 = vunpack.c.l.b16 %v1582
    %v1615 = vunpack.c.l.b16 %v1583
    %v1616 = vunpack.c.l.b16 %v1584
    %v1617 = vunpack.c.l.b16 %v1585
    %v1618 = vunpack.c.l.b16 %v1586
    %v1619 = vunpack.c.l.b16 %v1587
    %v1620 = vunpack.c.l.b16 %v1588
    %v1621 = vunpack.c.l.b16 %v1589
    %v1622 = vunpack.c.l.b16 %v1590
    %v1623 = vunpack.c.l.b16 %v1591
    %v1624 = vunpack.c.l.b16 %v1592
    %v1625 = vpack.c.b16 %v1610, %v1609
    %v1626 = vpack.c.b16 %v1612, %v1611
    %v1627 = vpack.c.b16 %v1614, %v1613
    %v1628 = vpack.c.b16 %v1616, %v1615
    %v1629 = vpack.c.b16 %v1618, %v1617
    %v1630 = vpack.c.b16 %v1620, %v1619
    %v1631 = vpack.c.b16 %v1622, %v1621
    %v1632 = vpack.c.b16 %v1624, %v1623
    %1641 = vmatprep.subr.bf16.mxu0 0
    %1642 = vmatpush1.bf16.msra.mxu0 %v1625
    %1643 = vmatprep.subr.bf16.mxu0 0
    %1644 = vmatpush1.bf16.msra.mxu0 %v1626
    %1645 = vmatprep.subr.bf16.mxu0 0
    %1646 = vmatpush1.bf16.msra.mxu0 %v1627
    %1647 = vmatprep.subr.bf16.mxu0 0
    %1648 = vmatpush1.bf16.msra.mxu0 %v1628
    %1649 = vmatprep.subr.bf16.mxu0 0
    %1650 = vmatpush1.bf16.msra.mxu0 %v1629
    %1651 = vmatprep.subr.bf16.mxu0 0
    %1652 = vmatpush1.bf16.msra.mxu0 %v1630
    %1653 = vmatprep.subr.bf16.mxu0 0
    %1654 = vmatpush1.bf16.msra.mxu0 %v1631
    %1655 = vmatprep.subr.bf16.mxu0 0
    %1656 = vmatpush1.bf16.msra.mxu0 %v1632
    %1657 = vmatprep.subr.bf16.mxu0 0
    %1658 = vmatpush1.bf16.msra.mxu0 0
    %1659 = vmatprep.subr.bf16.mxu0 0
    %1660 = vmatpush1.bf16.msra.mxu0 0
    %1661 = vmatprep.subr.bf16.mxu0 0
    %1662 = vmatpush1.bf16.msra.mxu0 0
    %1663 = vmatprep.subr.bf16.mxu0 0
    %1664 = vmatpush1.bf16.msra.mxu0 0
    %1665 = vmatprep.subr.bf16.mxu0 0
    %1666 = vmatpush1.bf16.msra.mxu0 0
    %1667 = vmatprep.subr.bf16.mxu0 0
    %1668 = vmatpush1.bf16.msra.mxu0 0
    %1669 = vmatprep.subr.bf16.mxu0 0
    %1670 = vmatpush1.bf16.msra.mxu0 0
    %1671 = vmatprep.subr.bf16.mxu0 0
    %1672 = vmatpush1.bf16.msra.mxu0 0
    %1673 = vmatprep.mubr.bf16.mxu0 0
    %1674 = vmatmul.mubr.bf16.gmra.mrb[0].mxu0 %v1560
    %v1675 = vpop.f32.mrb[0].mxu0
    %v1676 = vadd.f32 0.0, %v1675
    %v1677 = vpop.f32.mrb[0].mxu0
    %v1678 = vpop.f32.mrb[0].mxu0
    %v1679 = vadd.f32 0.0, %v1678
    %v1680 = vpop.f32.mrb[0].mxu0
    %1681 = vmatprep.mubr.bf16.mxu0 0
    %1682 = vmatmul.mubr.bf16.gmra.mrb[0].mxu0 %v1561
    %v1683 = vpop.f32.mrb[0].mxu0
    %v1684 = vadd.f32 0.0, %v1683
    %v1685 = vpop.f32.mrb[0].mxu0
    %v1686 = vpop.f32.mrb[0].mxu0
    %v1687 = vadd.f32 0.0, %v1686
    %v1688 = vpop.f32.mrb[0].mxu0
    %1689 = vmatprep.mubr.bf16.mxu0 0
    %1690 = vmatmul.mubr.bf16.gmra.mrb[0].mxu0 %v1562
    %v1691 = vpop.f32.mrb[0].mxu0
    %v1692 = vadd.f32 0.0, %v1691
    %v1693 = vpop.f32.mrb[0].mxu0
    %v1694 = vpop.f32.mrb[0].mxu0
    %v1695 = vadd.f32 0.0, %v1694
    %v1696 = vpop.f32.mrb[0].mxu0
    %1697 = vmatprep.mubr.bf16.mxu0 0
    %1698 = vmatmul.mubr.bf16.gmra.mrb[0].mxu0 %v1563
    %v1699 = vpop.f32.mrb[0].mxu0
    %v1700 = vadd.f32 0.0, %v1699
    %v1701 = vpop.f32.mrb[0].mxu0
    %v1702 = vpop.f32.mrb[0].mxu0
    %v1703 = vadd.f32 0.0, %v1702
    %v1704 = vpop.f32.mrb[0].mxu0
    %1705 = vmatprep.mubr.bf16.mxu0 0
    %1706 = vmatmul.mubr.bf16.gmra.mrb[0].mxu0 %v1564
    %v1707 = vpop.f32.mrb[0].mxu0
    %v1708 = vadd.f32 0.0, %v1707
    %v1709 = vpop.f32.mrb[0].mxu0
    %v1710 = vpop.f32.mrb[0].mxu0
    %v1711 = vadd.f32 0.0, %v1710
    %v1712 = vpop.f32.mrb[0].mxu0
    %1713 = vmatprep.mubr.bf16.mxu0 0
    %1714 = vmatmul.mubr.bf16.gmra.mrb[0].mxu0 %v1565
    %v1715 = vpop.f32.mrb[0].mxu0
    %v1716 = vadd.f32 0.0, %v1715
    %v1717 = vpop.f32.mrb[0].mxu0
    %v1718 = vpop.f32.mrb[0].mxu0
    %v1719 = vadd.f32 0.0, %v1718
    %v1720 = vpop.f32.mrb[0].mxu0
    %1721 = vmatprep.mubr.bf16.mxu0 0
    %1722 = vmatmul.mubr.bf16.gmra.mrb[0].mxu0 %v1566
    %v1723 = vpop.f32.mrb[0].mxu0
    %v1724 = vadd.f32 0.0, %v1723
    %v1725 = vpop.f32.mrb[0].mxu0
    %v1726 = vpop.f32.mrb[0].mxu0
    %v1727 = vadd.f32 0.0, %v1726
    %v1728 = vpop.f32.mrb[0].mxu0
    %1729 = vmatprep.mubr.bf16.mxu0 0
    %1730 = vmatmul.mubr.bf16.gmra.mrb[0].mxu0 %v1567
    %v1731 = vpop.f32.mrb[0].mxu0
    %v1732 = vadd.f32 0.0, %v1731
    %v1733 = vpop.f32.mrb[0].mxu0
    %v1734 = vpop.f32.mrb[0].mxu0
    %v1735 = vadd.f32 0.0, %v1734
    %v1736 = vpop.f32.mrb[0].mxu0
    %1737 = vmatprep.mubr.bf16.mxu0 0
    %1738 = vmatmul.mubr.bf16.gmra.mrb[0].mxu0 %v1568
    %v1739 = vpop.f32.mrb[0].mxu0
    %v1740 = vadd.f32 0.0, %v1739
    %v1741 = vpop.f32.mrb[0].mxu0
    %v1742 = vpop.f32.mrb[0].mxu0
    %v1743 = vadd.f32 0.0, %v1742
    %v1744 = vpop.f32.mrb[0].mxu0
    %1745 = vmatprep.mubr.bf16.mxu0 0
    %1746 = vmatmul.mubr.bf16.gmra.mrb[0].mxu0 %v1569
    %v1747 = vpop.f32.mrb[0].mxu0
    %v1748 = vadd.f32 0.0, %v1747
    %v1749 = vpop.f32.mrb[0].mxu0
    %v1750 = vpop.f32.mrb[0].mxu0
    %v1751 = vadd.f32 0.0, %v1750
    %v1752 = vpop.f32.mrb[0].mxu0
    %1753 = vmatprep.mubr.bf16.mxu0 0
    %1754 = vmatmul.mubr.bf16.gmra.mrb[0].mxu0 %v1570
    %v1755 = vpop.f32.mrb[0].mxu0
    %v1756 = vadd.f32 0.0, %v1755
    %v1757 = vpop.f32.mrb[0].mxu0
    %v1758 = vpop.f32.mrb[0].mxu0
    %v1759 = vadd.f32 0.0, %v1758
    %v1760 = vpop.f32.mrb[0].mxu0
    %1761 = vmatprep.mubr.bf16.mxu0 0
    %1762 = vmatmul.mubr.bf16.gmra.mrb[0].mxu0 %v1571
    %v1763 = vpop.f32.mrb[0].mxu0
    %v1764 = vadd.f32 0.0, %v1763
    %v1765 = vpop.f32.mrb[0].mxu0
    %v1766 = vpop.f32.mrb[0].mxu0
    %v1767 = vadd.f32 0.0, %v1766
    %v1768 = vpop.f32.mrb[0].mxu0
    %1769 = vmatprep.mubr.bf16.mxu0 0
    %1770 = vmatmul.mubr.bf16.gmra.mrb[0].mxu0 %v1572
    %v1771 = vpop.f32.mrb[0].mxu0
    %v1772 = vadd.f32 0.0, %v1771
    %v1773 = vpop.f32.mrb[0].mxu0
    %v1774 = vpop.f32.mrb[0].mxu0
    %v1775 = vadd.f32 0.0, %v1774
    %v1776 = vpop.f32.mrb[0].mxu0
    %1777 = vmatprep.mubr.bf16.mxu0 0
    %1778 = vmatmul.mubr.bf16.gmra.mrb[0].mxu0 %v1573
    %v1779 = vpop.f32.mrb[0].mxu0
    %v1780 = vadd.f32 0.0, %v1779
    %v1781 = vpop.f32.mrb[0].mxu0
    %v1782 = vpop.f32.mrb[0].mxu0
    %v1783 = vadd.f32 0.0, %v1782
    %v1784 = vpop.f32.mrb[0].mxu0
    %1785 = vmatprep.mubr.bf16.mxu0 0
    %1786 = vmatmul.mubr.bf16.gmra.mrb[0].mxu0 %v1574
    %v1787 = vpop.f32.mrb[0].mxu0
    %v1788 = vadd.f32 0.0, %v1787
    %v1789 = vpop.f32.mrb[0].mxu0
    %v1790 = vpop.f32.mrb[0].mxu0
    %v1791 = vadd.f32 0.0, %v1790
    %v1792 = vpop.f32.mrb[0].mxu0
    %1793 = vmatprep.mubr.bf16.mxu0 0
    %1794 = vmatmul.mubr.bf16.gmra.mrb[0].mxu0 %v1575
    %v1795 = vpop.f32.mrb[0].mxu0
    %v1796 = vadd.f32 0.0, %v1795
    %v1797 = vpop.f32.mrb[0].mxu0
    %v1798 = vpop.f32.mrb[0].mxu0
    %v1799 = vadd.f32 0.0, %v1798
    %v1800 = vpop.f32.mrb[0].mxu0
    %1801 = vdwg.mxu0
    %v1802 = vld [vmem:[#allocation6 + $0x5] sm:$0x1]
    %v1803 = vlaneseq
    %v1804 = vshrl.u32 %v1803, 7
    %v1805 = vsub.s32 0, %v1804
    %v1806 = vrot.slane %v1802, %v1805
    %v1807 = vadd.f32 %v1676, %v1806
    %v1808 = vadd.f32 %v1679, %v1806
    %v1809 = vadd.f32 %v1684, %v1806
    %v1810 = vadd.f32 %v1687, %v1806
    %v1811 = vadd.f32 %v1692, %v1806
    %v1812 = vadd.f32 %v1695, %v1806
    %v1813 = vadd.f32 %v1700, %v1806
    %v1814 = vadd.f32 %v1703, %v1806
    %v1815 = vadd.f32 %v1708, %v1806
    %v1816 = vadd.f32 %v1711, %v1806
    %v1817 = vadd.f32 %v1716, %v1806
    %v1818 = vadd.f32 %v1719, %v1806
    %v1819 = vadd.f32 %v1724, %v1806
    %v1820 = vadd.f32 %v1727, %v1806
    %v1821 = vadd.f32 %v1732, %v1806
    %v1822 = vadd.f32 %v1735, %v1806
    %v1823 = vadd.f32 %v1740, %v1806
    %v1824 = vadd.f32 %v1743, %v1806
    %v1825 = vadd.f32 %v1748, %v1806
    %v1826 = vadd.f32 %v1751, %v1806
    %v1827 = vadd.f32 %v1756, %v1806
    %v1828 = vadd.f32 %v1759, %v1806
    %v1829 = vadd.f32 %v1764, %v1806
    %v1830 = vadd.f32 %v1767, %v1806
    %v1831 = vadd.f32 %v1772, %v1806
    %v1832 = vadd.f32 %v1775, %v1806
    %v1833 = vadd.f32 %v1780, %v1806
    %v1834 = vadd.f32 %v1783, %v1806
    %v1835 = vadd.f32 %v1788, %v1806
    %v1836 = vadd.f32 %v1791, %v1806
    %v1837 = vadd.f32 %v1796, %v1806
    %v1838 = vadd.f32 %v1799, %v1806
    %v1839 = vxor.u32 %v1807, 2147483648
    %v1840 = vxor.u32 %v1808, 2147483648
    %v1841 = vxor.u32 %v1809, 2147483648
    %v1842 = vxor.u32 %v1810, 2147483648
    %v1843 = vxor.u32 %v1811, 2147483648
    %v1844 = vxor.u32 %v1812, 2147483648
    %v1845 = vxor.u32 %v1813, 2147483648
    %v1846 = vxor.u32 %v1814, 2147483648
    %v1847 = vxor.u32 %v1815, 2147483648
    %v1848 = vxor.u32 %v1816, 2147483648
    %v1849 = vxor.u32 %v1817, 2147483648
    %v1850 = vxor.u32 %v1818, 2147483648
    %v1851 = vxor.u32 %v1819, 2147483648
    %v1852 = vxor.u32 %v1820, 2147483648
    %v1853 = vxor.u32 %v1821, 2147483648
    %v1854 = vxor.u32 %v1822, 2147483648
    %v1855 = vxor.u32 %v1823, 2147483648
    %v1856 = vxor.u32 %v1824, 2147483648
    %v1857 = vxor.u32 %v1825, 2147483648
    %v1858 = vxor.u32 %v1826, 2147483648
    %v1859 = vxor.u32 %v1827, 2147483648
    %v1860 = vxor.u32 %v1828, 2147483648
    %v1861 = vxor.u32 %v1829, 2147483648
    %v1862 = vxor.u32 %v1830, 2147483648
    %v1863 = vxor.u32 %v1831, 2147483648
    %v1864 = vxor.u32 %v1832, 2147483648
    %v1865 = vxor.u32 %v1833, 2147483648
    %v1866 = vxor.u32 %v1834, 2147483648
    %v1867 = vxor.u32 %v1835, 2147483648
    %v1868 = vxor.u32 %v1836, 2147483648
    %v1869 = vxor.u32 %v1837, 2147483648
    %v1870 = vxor.u32 %v1838, 2147483648
    %v1871 = vmul.f32 %v1839, 1.442695
    %v1872 = vpow.pop %v1871
    %v1873 = vmul.f32 %v1840, 1.442695
    %v1874 = vpow.pop %v1873
    %v1875 = vmul.f32 %v1841, 1.442695
    %v1876 = vpow.pop %v1875
    %v1877 = vmul.f32 %v1842, 1.442695
    %v1878 = vpow.pop %v1877
    %v1879 = vmul.f32 %v1843, 1.442695
    %v1880 = vpow.pop %v1879
    %v1881 = vmul.f32 %v1844, 1.442695
    %v1882 = vpow.pop %v1881
    %v1883 = vmul.f32 %v1845, 1.442695
    %v1884 = vpow.pop %v1883
    %v1885 = vmul.f32 %v1846, 1.442695
    %v1886 = vpow.pop %v1885
    %v1887 = vmul.f32 %v1847, 1.442695
    %v1888 = vpow.pop %v1887
    %v1889 = vmul.f32 %v1848, 1.442695
    %v1890 = vpow.pop %v1889
    %v1891 = vmul.f32 %v1849, 1.442695
    %v1892 = vpow.pop %v1891
    %v1893 = vmul.f32 %v1850, 1.442695
    %v1894 = vpow.pop %v1893
    %v1895 = vmul.f32 %v1851, 1.442695
    %v1896 = vpow.pop %v1895
    %v1897 = vmul.f32 %v1852, 1.442695
    %v1898 = vpow.pop %v1897
    %v1899 = vmul.f32 %v1853, 1.442695
    %v1900 = vpow.pop %v1899
    %v1901 = vmul.f32 %v1854, 1.442695
    %v1902 = vpow.pop %v1901
    %v1903 = vmul.f32 %v1855, 1.442695
    %v1904 = vpow.pop %v1903
    %v1905 = vmul.f32 %v1856, 1.442695
    %v1906 = vpow.pop %v1905
    %v1907 = vmul.f32 %v1857, 1.442695
    %v1908 = vpow.pop %v1907
    %v1909 = vmul.f32 %v1858, 1.442695
    %v1910 = vpow.pop %v1909
    %v1911 = vmul.f32 %v1859, 1.442695
    %v1912 = vpow.pop %v1911
    %v1913 = vmul.f32 %v1860, 1.442695
    %v1914 = vpow.pop %v1913
    %v1915 = vmul.f32 %v1861, 1.442695
    %v1916 = vpow.pop %v1915
    %v1917 = vmul.f32 %v1862, 1.442695
    %v1918 = vpow.pop %v1917
    %v1919 = vmul.f32 %v1863, 1.442695
    %v1920 = vpow.pop %v1919
    %v1921 = vmul.f32 %v1864, 1.442695
    %v1922 = vpow.pop %v1921
    %v1923 = vmul.f32 %v1865, 1.442695
    %v1924 = vpow.pop %v1923
    %v1925 = vmul.f32 %v1866, 1.442695
    %v1926 = vpow.pop %v1925
    %v1927 = vmul.f32 %v1867, 1.442695
    %v1928 = vpow.pop %v1927
    %v1929 = vmul.f32 %v1868, 1.442695
    %v1930 = vpow.pop %v1929
    %v1931 = vmul.f32 %v1869, 1.442695
    %v1932 = vpow.pop %v1931
    %v1933 = vmul.f32 %v1870, 1.442695
    %v1934 = vpow.pop %v1933
    %v1935 = vadd.f32 %v1872, 1.0
    %v1936 = vadd.f32 %v1874, 1.0
    %v1937 = vadd.f32 %v1876, 1.0
    %v1938 = vadd.f32 %v1878, 1.0
    %v1939 = vadd.f32 %v1880, 1.0
    %v1940 = vadd.f32 %v1882, 1.0
    %v1941 = vadd.f32 %v1884, 1.0
    %v1942 = vadd.f32 %v1886, 1.0
    %v1943 = vadd.f32 %v1888, 1.0
    %v1944 = vadd.f32 %v1890, 1.0
    %v1945 = vadd.f32 %v1892, 1.0
    %v1946 = vadd.f32 %v1894, 1.0
    %v1947 = vadd.f32 %v1896, 1.0
    %v1948 = vadd.f32 %v1898, 1.0
    %v1949 = vadd.f32 %v1900, 1.0
    %v1950 = vadd.f32 %v1902, 1.0
    %v1951 = vadd.f32 %v1904, 1.0
    %v1952 = vadd.f32 %v1906, 1.0
    %v1953 = vadd.f32 %v1908, 1.0
    %v1954 = vadd.f32 %v1910, 1.0
    %v1955 = vadd.f32 %v1912, 1.0
    %v1956 = vadd.f32 %v1914, 1.0
    %v1957 = vadd.f32 %v1916, 1.0
    %v1958 = vadd.f32 %v1918, 1.0
    %v1959 = vadd.f32 %v1920, 1.0
    %v1960 = vadd.f32 %v1922, 1.0
    %v1961 = vadd.f32 %v1924, 1.0
    %v1962 = vadd.f32 %v1926, 1.0
    %v1963 = vadd.f32 %v1928, 1.0
    %v1964 = vadd.f32 %v1930, 1.0
    %v1965 = vadd.f32 %v1932, 1.0
    %v1966 = vadd.f32 %v1934, 1.0
    %v1967 = vrcp.pop %v1935
    %v1968 = vmul.f32 1.0, %v1967
    %v1969 = vrcp.pop %v1936
    %v1970 = vmul.f32 1.0, %v1969
    %v1971 = vrcp.pop %v1937
    %v1972 = vmul.f32 1.0, %v1971
    %v1973 = vrcp.pop %v1938
    %v1974 = vmul.f32 1.0, %v1973
    %v1975 = vrcp.pop %v1939
    %v1976 = vmul.f32 1.0, %v1975
    %v1977 = vrcp.pop %v1940
    %v1978 = vmul.f32 1.0, %v1977
    %v1979 = vrcp.pop %v1941
    %v1980 = vmul.f32 1.0, %v1979
    %v1981 = vrcp.pop %v1942
    %v1982 = vmul.f32 1.0, %v1981
    %v1983 = vrcp.pop %v1943
    %v1984 = vmul.f32 1.0, %v1983
    %v1985 = vrcp.pop %v1944
    %v1986 = vmul.f32 1.0, %v1985
    %v1987 = vrcp.pop %v1945
    %v1988 = vmul.f32 1.0, %v1987
    %v1989 = vrcp.pop %v1946
    %v1990 = vmul.f32 1.0, %v1989
    %v1991 = vrcp.pop %v1947
    %v1992 = vmul.f32 1.0, %v1991
    %v1993 = vrcp.pop %v1948
    %v1994 = vmul.f32 1.0, %v1993
    %v1995 = vrcp.pop %v1949
    %v1996 = vmul.f32 1.0, %v1995
    %v1997 = vrcp.pop %v1950
    %v1998 = vmul.f32 1.0, %v1997
    %v1999 = vrcp.pop %v1951
    %v2000 = vmul.f32 1.0, %v1999
    %v2001 = vrcp.pop %v1952
    %v2002 = vmul.f32 1.0, %v2001
    %v2003 = vrcp.pop %v1953
    %v2004 = vmul.f32 1.0, %v2003
    %v2005 = vrcp.pop %v1954
    %v2006 = vmul.f32 1.0, %v2005
    %v2007 = vrcp.pop %v1955
    %v2008 = vmul.f32 1.0, %v2007
    %v2009 = vrcp.pop %v1956
    %v2010 = vmul.f32 1.0, %v2009
    %v2011 = vrcp.pop %v1957
    %v2012 = vmul.f32 1.0, %v2011
    %v2013 = vrcp.pop %v1958
    %v2014 = vmul.f32 1.0, %v2013
    %v2015 = vrcp.pop %v1959
    %v2016 = vmul.f32 1.0, %v2015
    %v2017 = vrcp.pop %v1960
    %v2018 = vmul.f32 1.0, %v2017
    %v2019 = vrcp.pop %v1961
    %v2020 = vmul.f32 1.0, %v2019
    %v2021 = vrcp.pop %v1962
    %v2022 = vmul.f32 1.0, %v2021
    %v2023 = vrcp.pop %v1963
    %v2024 = vmul.f32 1.0, %v2023
    %v2025 = vrcp.pop %v1964
    %v2026 = vmul.f32 1.0, %v2025
    %v2027 = vrcp.pop %v1965
    %v2028 = vmul.f32 1.0, %v2027
    %v2029 = vrcp.pop %v1966
    %v2030 = vmul.f32 1.0, %v2029
    %vm2031 = vcmask 7168
    %2032 = vst.msk [vmem:[%s3] sm:$0xff] %vm2031, %v1968
    %2033 = vst.msk [vmem:[%s3 + $0x8] sm:$0xff] %vm2031, %v1970
    %2034 = vst.msk [vmem:[%s3 + $0x10] sm:$0xff] %vm2031, %v1972
    %2035 = vst.msk [vmem:[%s3 + $0x18] sm:$0xff] %vm2031, %v1974
    %2036 = vst.msk [vmem:[%s3 + $0x20] sm:$0xff] %vm2031, %v1976
    %2037 = vst.msk [vmem:[%s3 + $0x28] sm:$0xff] %vm2031, %v1978
    %2038 = vst.msk [vmem:[%s3 + $0x30] sm:$0xff] %vm2031, %v1980
    %2039 = vst.msk [vmem:[%s3 + $0x38] sm:$0xff] %vm2031, %v1982
    %2040 = vst.msk [vmem:[%s3 + $0x40] sm:$0xff] %vm2031, %v1984
    %2041 = vst.msk [vmem:[%s3 + $0x48] sm:$0xff] %vm2031, %v1986
    %2042 = vst.msk [vmem:[%s3 + $0x50] sm:$0xff] %vm2031, %v1988
    %2043 = vst.msk [vmem:[%s3 + $0x58] sm:$0xff] %vm2031, %v1990
    %2044 = vst.msk [vmem:[%s3 + $0x60] sm:$0xff] %vm2031, %v1992
    %2045 = vst.msk [vmem:[%s3 + $0x68] sm:$0xff] %vm2031, %v1994
    %2046 = vst.msk [vmem:[%s3 + $0x70] sm:$0xff] %vm2031, %v1996
    %2047 = vst.msk [vmem:[%s3 + $0x78] sm:$0xff] %vm2031, %v1998
    %2048 = vst.msk [vmem:[%s3 + $0x80] sm:$0xff] %vm2031, %v2000
    %2049 = vst.msk [vmem:[%s3 + $0x88] sm:$0xff] %vm2031, %v2002
    %2050 = vst.msk [vmem:[%s3 + $0x90] sm:$0xff] %vm2031, %v2004
    %2051 = vst.msk [vmem:[%s3 + $0x98] sm:$0xff] %vm2031, %v2006
    %2052 = vst.msk [vmem:[%s3 + $0xa0] sm:$0xff] %vm2031, %v2008
    %2053 = vst.msk [vmem:[%s3 + $0xa8] sm:$0xff] %vm2031, %v2010
    %2054 = vst.msk [vmem:[%s3 + $0xb0] sm:$0xff] %vm2031, %v2012
    %2055 = vst.msk [vmem:[%s3 + $0xb8] sm:$0xff] %vm2031, %v2014
    %2056 = vst.msk [vmem:[%s3 + $0xc0] sm:$0xff] %vm2031, %v2016
    %2057 = vst.msk [vmem:[%s3 + $0xc8] sm:$0xff] %vm2031, %v2018
    %2058 = vst.msk [vmem:[%s3 + $0xd0] sm:$0xff] %vm2031, %v2020
    %2059 = vst.msk [vmem:[%s3 + $0xd8] sm:$0xff] %vm2031, %v2022
    %2060 = vst.msk [vmem:[%s3 + $0xe0] sm:$0xff] %vm2031, %v2024
    %2061 = vst.msk [vmem:[%s3 + $0xe8] sm:$0xff] %vm2031, %v2026
    %2062 = vst.msk [vmem:[%s3 + $0xf0] sm:$0xff] %vm2031, %v2028
    %2063 = vst.msk [vmem:[%s3 + $0xf8] sm:$0xff] %vm2031, %v2030
    // Predicated region
    $region26: #{tpu_custom_call.1} parent=1 // pred_check
      _
    $region27: #{tpu_custom_call.1} parent=1 // pred_check_branch
      %2065 = sbr.rel (0) target = $region29
    $region28: #{tpu_custom_call.1} parent=1 // pred_region
      _
    $region29: #{tpu_custom_call.1} parent=1 // pred_fallthru
      _
    // Predicated region
    $region30: #{tpu_custom_call.1} parent=1 // pred_check
      _
    $region31: #{tpu_custom_call.1} parent=1 // pred_check_branch
      %2067 = sbr.rel (0) target = $region33
    $region32: #{tpu_custom_call.1} parent=1 // pred_region
      _
    $region33: #{tpu_custom_call.1} parent=1 // pred_fallthru
      _
    %2068 = vsyncpa [#allocation3], 1
    %2069 = vsyncpa [#allocation5], 1

</llo_original>
